<compile_context>
chip_gen: v7x
topology: tpu7x:2x2x1
jax: 0.10.0
libtpu: 0.0.40
codegen_flags: <defaults>
</compile_context>

<pallas_src>
import functools

import jax
import jax.numpy as jnp
from jax.experimental import pallas as pl
from jax.experimental.pallas import tpu as pltpu


def _round_up(x, m):
    return ((x + m - 1) // m) * m


# --------------------------------------------------------------------------
# Kernel 1: y = relu?(x @ w + b), M-tiled grid.  Used for both im2col convs.
# --------------------------------------------------------------------------
def _matmul_bias_act_kernel(x_ref, w_ref, b_ref, o_ref, *, apply_relu):
    acc = jnp.dot(x_ref[...], w_ref[...], preferred_element_type=jnp.float32)
    acc = acc + b_ref[...]
    if apply_relu:
        acc = jnp.maximum(acc, 0.0)
    o_ref[...] = acc.astype(o_ref.dtype)


def pallas_linear(x, w, b, *, relu=False, out_dtype=jnp.bfloat16, tm_max=512):
    """y = relu?(x @ w + b). x:[M,K] (bf16), w:[K,N] (bf16), b:[1,N] (f32)."""
    M, K = x.shape
    K2, N = w.shape
    assert K == K2, (K, K2)
    tm = min(tm_max, _round_up(M, 16))          # bf16-friendly sublane multiple
    Mp = _round_up(M, tm)
    if Mp != M:
        x = jnp.pad(x, ((0, Mp - M), (0, 0)))   # cheap row padding only

    out = pl.pallas_call(
        functools.partial(_matmul_bias_act_kernel, apply_relu=relu),
        out_shape=jax.ShapeDtypeStruct((Mp, N), out_dtype),
        grid=(Mp // tm,),
        in_specs=[
            pl.BlockSpec((tm, K), lambda i: (i, 0)),   # activations: tiled on M
            pl.BlockSpec((K, N), lambda i: (0, 0)),    # weights: VMEM-resident
            pl.BlockSpec((1, N), lambda i: (0, 0)),    # bias
        ],
        out_specs=pl.BlockSpec((tm, N), lambda i: (i, 0)),
        compiler_params=pltpu.CompilerParams(dimension_semantics=("parallel",)),
    )(x, w, b)
    return out[:M] if Mp != M else out


# --------------------------------------------------------------------------
# Kernel 2: fused fc1 -> relu -> fc2 -> relu -> fc3 in a single pallas_call.
# All weights (<1 MB total, bf16) stay in VMEM; intermediates never hit HBM.
# --------------------------------------------------------------------------
def _fc_chain_kernel(x_ref, w1_ref, b1_ref, w2_ref, b2_ref, w3_ref, b3_ref,
                     o_ref):
    h = jnp.dot(x_ref[...], w1_ref[...], preferred_element_type=jnp.float32)
    h = jnp.maximum(h + b1_ref[...], 0.0).astype(jnp.bfloat16)
    h = jnp.dot(h, w2_ref[...], preferred_element_type=jnp.float32)
    h = jnp.maximum(h + b2_ref[...], 0.0).astype(jnp.bfloat16)
    h = jnp.dot(h, w3_ref[...], preferred_element_type=jnp.float32)
    o_ref[...] = (h + b3_ref[...]).astype(o_ref.dtype)


def pallas_fc_chain(feat, w1, b1, w2, b2, w3, b3, *, tm_max=512):
    M, K1 = feat.shape
    N3 = w3.shape[1]
    tm = min(tm_max, _round_up(M, 16))
    Mp = _round_up(M, tm)
    if Mp != M:
        feat = jnp.pad(feat, ((0, Mp - M), (0, 0)))

    def full_spec(shape):
        return pl.BlockSpec(shape, lambda i: (0, 0))

    out = pl.pallas_call(
        _fc_chain_kernel,
        out_shape=jax.ShapeDtypeStruct((Mp, N3), jnp.float32),
        grid=(Mp // tm,),
        in_specs=[
            pl.BlockSpec((tm, K1), lambda i: (i, 0)),
            full_spec(w1.shape), full_spec(b1.shape),
            full_spec(w2.shape), full_spec(b2.shape),
            full_spec(w3.shape), full_spec(b3.shape),
        ],
        out_specs=pl.BlockSpec((tm, N3), lambda i: (i, 0)),
        compiler_params=pltpu.CompilerParams(dimension_semantics=("parallel",)),
    )(feat, w1, b1, w2, b2, w3, b3)
    return out[:M] if Mp != M else out


# ------------------------------ Glue helpers --------------------------------
def im2col_nhwc(x, k):
    """x: [B,H,W,C] -> patches [B*Ho*Wo, k*k*C] (valid conv, (kh,kw,cin) order)."""
    B, H, W, C = x.shape
    Ho, Wo = H - k + 1, W - k + 1
    cols = []
    for kh in range(k):
        for kw in range(k):
            cols.append(x[:, kh:kh + Ho, kw:kw + Wo, :])        # [B,Ho,Wo,C]
    patches = jnp.stack(cols, axis=3)                            # [B,Ho,Wo,k*k,C]
    return patches.reshape(B * Ho * Wo, k * k * C)


def avgpool2x2(x):
    """x: [B,H,W,C] -> [B,H/2,W/2,C] 2x2 average pool (VPU reshape-mean)."""
    B, H, W, C = x.shape
    xf = x.astype(jnp.float32).reshape(B, H // 2, 2, W // 2, 2, C)
    return xf.mean(axis=(2, 4)).astype(x.dtype)


# ------------------------------ Parameters -----------------------------------
def init_params(key):
    ks = jax.random.split(key, 10)
    return {
        "w1": jax.random.normal(ks[0], (6, 1, 5, 5), jnp.float32) * 0.2,
        "b1": jax.random.normal(ks[1], (6,), jnp.float32) * 0.05,
        "w2": jax.random.normal(ks[2], (16, 6, 5, 5), jnp.float32) * 0.08,
        "b2": jax.random.normal(ks[3], (16,), jnp.float32) * 0.05,
        "fc1_w": jax.random.normal(ks[4], (120, 400), jnp.float32) * 0.05,  # [out,in]
        "fc1_b": jax.random.normal(ks[5], (120,), jnp.float32) * 0.05,
        "fc2_w": jax.random.normal(ks[6], (84, 120), jnp.float32) * 0.09,
        "fc2_b": jax.random.normal(ks[7], (84,), jnp.float32) * 0.05,
        "fc3_w": jax.random.normal(ks[8], (2, 84), jnp.float32) * 0.1,
        "fc3_b": jax.random.normal(ks[9], (2,), jnp.float32) * 0.05,
    }


def prepare_params(p):
    """Hoisted once: kernel-ready [K,N] bf16 weight slabs, [1,N] f32 biases."""
    return {
        # conv weights: (cout,cin,kh,kw) -> (kh,kw,cin,cout) -> [k*k*cin, cout]
        "w1": jnp.transpose(p["w1"], (2, 3, 1, 0)).reshape(25, 6).astype(jnp.bfloat16),
        "b1": p["b1"].reshape(1, 6).astype(jnp.float32),
        "w2": jnp.transpose(p["w2"], (2, 3, 1, 0)).reshape(150, 16).astype(jnp.bfloat16),
        "b2": p["b2"].reshape(1, 16).astype(jnp.float32),
        # fc weights: torch [out,in] -> [in,out]
        "fc1_w": p["fc1_w"].T.astype(jnp.bfloat16),
        "fc1_b": p["fc1_b"].reshape(1, -1).astype(jnp.float32),
        "fc2_w": p["fc2_w"].T.astype(jnp.bfloat16),
        "fc2_b": p["fc2_b"].reshape(1, -1).astype(jnp.float32),
        "fc3_w": p["fc3_w"].T.astype(jnp.bfloat16),
        "fc3_b": p["fc3_b"].reshape(1, -1).astype(jnp.float32),
    }


# ------------------------------ Forward pass ----------------------------------
def forward(x_nchw, kp):
    B = x_nchw.shape[0]
    x = jnp.transpose(x_nchw, (0, 2, 3, 1)).astype(jnp.bfloat16)   # NHWC [B,28,28,1]

    # conv1 (pad=2) + ReLU  -> [B,28,28,6]
    xp = jnp.pad(x, ((0, 0), (2, 2), (2, 2), (0, 0)))
    p1 = im2col_nhwc(xp, 5)                                        # [B*784, 25]
    a1 = pallas_linear(p1, kp["w1"], kp["b1"], relu=True)          # [B*784, 6]
    a1 = a1.reshape(B, 28, 28, 6)

    # avgpool 2x2 -> [B,14,14,6]   (glue VPU reshape-mean, no matmul)
    z1 = avgpool2x2(a1)

    # conv2 (valid) + ReLU -> [B,10,10,16]
    p2 = im2col_nhwc(z1, 5)                                        # [B*100, 150]
    a2 = pallas_linear(p2, kp["w2"], kp["b2"], relu=True)          # [B*100, 16]
    a2 = a2.reshape(B, 10, 10, 16)

    # avgpool 2x2 -> [B,5,5,16]
    z2 = avgpool2x2(a2)

    # flatten in PyTorch's NCHW order: [B, 16*5*5]
    feat = jnp.transpose(z2, (0, 3, 1, 2)).reshape(B, 400).astype(jnp.bfloat16)

    # fused fc1 -> relu -> fc2 -> relu -> fc3 (single pallas_call)
    out = pallas_fc_chain(
        feat,
        kp["fc1_w"], kp["fc1_b"],
        kp["fc2_w"], kp["fc2_b"],
        kp["fc3_w"], kp["fc3_b"],
    )
    return out                                                      # [B, 2] f32


if __name__ == "__main__":
    key = jax.random.PRNGKey(0)
    pkey, xkey = jax.random.split(key)
    params = init_params(pkey)
    kparams = prepare_params(params)
    # Conv/pool geometry implies 28x28 single-channel input (LeNet-style).
    x = jax.random.normal(xkey, (2, 1, 28, 28), jnp.float32)

    fwd = jax.jit(forward)
    y = fwd(x, kparams)
    y = jax.block_until_ready(y)
    assert y.shape == (2, 2), y.shape
    assert bool(jnp.all(jnp.isfinite(y)))
    print("KERNEL_OK")
</pallas_src>

<mosaic_0001>
module attributes {stable_mosaic.version = 11 : i64} {
  func.func @_matmul_bias_act_kernel(%arg0: i32, %arg1: memref<512x25xbf16, #tpu.memory_space<vmem>>, %arg2: memref<25x6xbf16, #tpu.memory_space<vmem>>, %arg3: memref<1x6xf32, #tpu.memory_space<vmem>>, %arg4: memref<512x6xbf16, #tpu.memory_space<vmem>>) attributes {dimension_semantics = [#tpu.dimension_semantics<parallel>], iteration_bounds = array<i64: 4>, scalar_prefetch = 0 : i64, scratch_operands = 0 : i64, tpu.core_type = #tpu.core_type<tc>, window_params = [{transform_indices = @transform_0, window_bounds = array<i64: 512, 25>}, {pipeline_mode = #tpu.pipeline_mode<synchronous>, transform_indices = @transform_1, window_bounds = array<i64: 25, 6>}, {pipeline_mode = #tpu.pipeline_mode<synchronous>, transform_indices = @transform_2, window_bounds = array<i64: 1, 6>}, {transform_indices = @transform_3, window_bounds = array<i64: 512, 6>}]} {
    %c0 = arith.constant 0 : index
    %c0_0 = arith.constant 0 : index
    %0 = vector.load %arg1[%c0, %c0_0] : memref<512x25xbf16, #tpu.memory_space<vmem>>, vector<512x25xbf16>
    %c0_1 = arith.constant 0 : index
    %c0_2 = arith.constant 0 : index
    %1 = vector.load %arg2[%c0_1, %c0_2] : memref<25x6xbf16, #tpu.memory_space<vmem>>, vector<25x6xbf16>
    %cst = arith.constant dense<0.000000e+00> : vector<512x6xf32>
    %2 = tpu.matmul %0, %1, %cst {dimension_numbers = #tpu.dot_dimension_numbers<[1], [0], [0], [1], [0, 0, 1, 1], [], []>} : vector<512x25xbf16>, vector<25x6xbf16>, vector<512x6xf32> -> vector<512x6xf32>
    %c0_3 = arith.constant 0 : index
    %c0_4 = arith.constant 0 : index
    %3 = vector.load %arg3[%c0_3, %c0_4] : memref<1x6xf32, #tpu.memory_space<vmem>>, vector<1x6xf32>
    %4 = vector.broadcast %3 : vector<1x6xf32> to vector<512x6xf32>
    %5 = arith.addf %2, %4 : vector<512x6xf32>
    %cst_5 = arith.constant 0.000000e+00 : f32
    %6 = vector.broadcast %cst_5 : f32 to vector<512x6xf32>
    %7 = arith.maximumf %5, %6 : vector<512x6xf32>
    %8 = arith.truncf %7 : vector<512x6xf32> to vector<512x6xbf16>
    %c0_6 = arith.constant 0 : index
    %c0_7 = arith.constant 0 : index
    %9 = vector.load %arg4[%c0_6, %c0_7] : memref<512x6xbf16, #tpu.memory_space<vmem>>, vector<512x6xbf16>
    tpu.vector_store %arg4[%c0_6, %c0_7], %8 {strides = array<i32>} : memref<512x6xbf16, #tpu.memory_space<vmem>>, vector<512x6xbf16>,
    return
  }
  func.func @transform_0(%arg0: i32) -> (i32, i32) {
    %c0_i32 = arith.constant 0 : i32
    %c0_i32_0 = arith.constant 0 : i32
    return %arg0, %c0_i32 : i32, i32
  }
  func.func @transform_1(%arg0: i32) -> (i32, i32) {
    %c0_i32 = arith.constant 0 : i32
    %c0_i32_0 = arith.constant 0 : i32
    %c0_i32_1 = arith.constant 0 : i32
    return %c0_i32, %c0_i32_0 : i32, i32
  }
  func.func @transform_2(%arg0: i32) -> (i32, i32) {
    %c0_i32 = arith.constant 0 : i32
    %c0_i32_0 = arith.constant 0 : i32
    %c0_i32_1 = arith.constant 0 : i32
    return %c0_i32, %c0_i32_0 : i32, i32
  }
  func.func @transform_3(%arg0: i32) -> (i32, i32) {
    %c0_i32 = arith.constant 0 : i32
    %c0_i32_0 = arith.constant 0 : i32
    return %arg0, %c0_i32 : i32, i32
  }
}

module attributes {stable_mosaic.version = 11 : i64} {
  func.func @_matmul_bias_act_kernel(%arg0: i32, %arg1: memref<208x150xbf16, #tpu.memory_space<vmem>>, %arg2: memref<150x16xbf16, #tpu.memory_space<vmem>>, %arg3: memref<1x16xf32, #tpu.memory_space<vmem>>, %arg4: memref<208x16xbf16, #tpu.memory_space<vmem>>) attributes {dimension_semantics = [#tpu.dimension_semantics<parallel>], iteration_bounds = array<i64: 1>, scalar_prefetch = 0 : i64, scratch_operands = 0 : i64, tpu.core_type = #tpu.core_type<tc>, window_params = [{transform_indices = @transform_0, window_bounds = array<i64: 208, 150>}, {pipeline_mode = #tpu.pipeline_mode<synchronous>, transform_indices = @transform_1, window_bounds = array<i64: 150, 16>}, {pipeline_mode = #tpu.pipeline_mode<synchronous>, transform_indices = @transform_2, window_bounds = array<i64: 1, 16>}, {transform_indices = @transform_3, window_bounds = array<i64: 208, 16>}]} {
    %c0 = arith.constant 0 : index
    %c0_0 = arith.constant 0 : index
    %0 = vector.load %arg1[%c0, %c0_0] : memref<208x150xbf16, #tpu.memory_space<vmem>>, vector<208x150xbf16>
    %c0_1 = arith.constant 0 : index
    %c0_2 = arith.constant 0 : index
    %1 = vector.load %arg2[%c0_1, %c0_2] : memref<150x16xbf16, #tpu.memory_space<vmem>>, vector<150x16xbf16>
    %cst = arith.constant dense<0.000000e+00> : vector<208x16xf32>
    %2 = tpu.matmul %0, %1, %cst {dimension_numbers = #tpu.dot_dimension_numbers<[1], [0], [0], [1], [0, 0, 1, 1], [], []>} : vector<208x150xbf16>, vector<150x16xbf16>, vector<208x16xf32> -> vector<208x16xf32>
    %c0_3 = arith.constant 0 : index
    %c0_4 = arith.constant 0 : index
    %3 = vector.load %arg3[%c0_3, %c0_4] : memref<1x16xf32, #tpu.memory_space<vmem>>, vector<1x16xf32>
    %4 = vector.broadcast %3 : vector<1x16xf32> to vector<208x16xf32>
    %5 = arith.addf %2, %4 : vector<208x16xf32>
    %cst_5 = arith.constant 0.000000e+00 : f32
    %6 = vector.broadcast %cst_5 : f32 to vector<208x16xf32>
    %7 = arith.maximumf %5, %6 : vector<208x16xf32>
    %8 = arith.truncf %7 : vector<208x16xf32> to vector<208x16xbf16>
    %c0_6 = arith.constant 0 : index
    %c0_7 = arith.constant 0 : index
    %9 = vector.load %arg4[%c0_6, %c0_7] : memref<208x16xbf16, #tpu.memory_space<vmem>>, vector<208x16xbf16>
    tpu.vector_store %arg4[%c0_6, %c0_7], %8 {strides = array<i32>} : memref<208x16xbf16, #tpu.memory_space<vmem>>, vector<208x16xbf16>,
    return
  }
  func.func @transform_0(%arg0: i32) -> (i32, i32) {
    %c0_i32 = arith.constant 0 : i32
    %c0_i32_0 = arith.constant 0 : i32
    return %arg0, %c0_i32 : i32, i32
  }
  func.func @transform_1(%arg0: i32) -> (i32, i32) {
    %c0_i32 = arith.constant 0 : i32
    %c0_i32_0 = arith.constant 0 : i32
    %c0_i32_1 = arith.constant 0 : i32
    return %c0_i32, %c0_i32_0 : i32, i32
  }
  func.func @transform_2(%arg0: i32) -> (i32, i32) {
    %c0_i32 = arith.constant 0 : i32
    %c0_i32_0 = arith.constant 0 : i32
    %c0_i32_1 = arith.constant 0 : i32
    return %c0_i32, %c0_i32_0 : i32, i32
  }
  func.func @transform_3(%arg0: i32) -> (i32, i32) {
    %c0_i32 = arith.constant 0 : i32
    %c0_i32_0 = arith.constant 0 : i32
    return %arg0, %c0_i32 : i32, i32
  }
}

module attributes {stable_mosaic.version = 11 : i64} {
  func.func @_fc_chain_kernel(%arg0: i32, %arg1: memref<16x400xbf16, #tpu.memory_space<vmem>>, %arg2: memref<400x120xbf16, #tpu.memory_space<vmem>>, %arg3: memref<1x120xf32, #tpu.memory_space<vmem>>, %arg4: memref<120x84xbf16, #tpu.memory_space<vmem>>, %arg5: memref<1x84xf32, #tpu.memory_space<vmem>>, %arg6: memref<84x2xbf16, #tpu.memory_space<vmem>>, %arg7: memref<1x2xf32, #tpu.memory_space<vmem>>, %arg8: memref<16x2xf32, #tpu.memory_space<vmem>>) attributes {dimension_semantics = [#tpu.dimension_semantics<parallel>], iteration_bounds = array<i64: 1>, scalar_prefetch = 0 : i64, scratch_operands = 0 : i64, tpu.core_type = #tpu.core_type<tc>, window_params = [{transform_indices = @transform_0, window_bounds = array<i64: 16, 400>}, {pipeline_mode = #tpu.pipeline_mode<synchronous>, transform_indices = @transform_1, window_bounds = array<i64: 400, 120>}, {pipeline_mode = #tpu.pipeline_mode<synchronous>, transform_indices = @transform_2, window_bounds = array<i64: 1, 120>}, {pipeline_mode = #tpu.pipeline_mode<synchronous>, transform_indices = @transform_3, window_bounds = array<i64: 120, 84>}, {pipeline_mode = #tpu.pipeline_mode<synchronous>, transform_indices = @transform_4, window_bounds = array<i64: 1, 84>}, {pipeline_mode = #tpu.pipeline_mode<synchronous>, transform_indices = @transform_5, window_bounds = array<i64: 84, 2>}, {pipeline_mode = #tpu.pipeline_mode<synchronous>, transform_indices = @transform_6, window_bounds = array<i64: 1, 2>}, {transform_indices = @transform_7, window_bounds = array<i64: 16, 2>}]} {
    %c0 = arith.constant 0 : index
    %c0_0 = arith.constant 0 : index
    %0 = vector.load %arg1[%c0, %c0_0] : memref<16x400xbf16, #tpu.memory_space<vmem>>, vector<16x400xbf16>
    %c0_1 = arith.constant 0 : index
    %c0_2 = arith.constant 0 : index
    %1 = vector.load %arg2[%c0_1, %c0_2] : memref<400x120xbf16, #tpu.memory_space<vmem>>, vector<400x120xbf16>
    %cst = arith.constant dense<0.000000e+00> : vector<16x120xf32>
    %2 = tpu.matmul %0, %1, %cst {dimension_numbers = #tpu.dot_dimension_numbers<[1], [0], [0], [1], [0, 0, 1, 1], [], []>} : vector<16x400xbf16>, vector<400x120xbf16>, vector<16x120xf32> -> vector<16x120xf32>
    %c0_3 = arith.constant 0 : index
    %c0_4 = arith.constant 0 : index
    %3 = vector.load %arg3[%c0_3, %c0_4] : memref<1x120xf32, #tpu.memory_space<vmem>>, vector<1x120xf32>
    %4 = vector.broadcast %3 : vector<1x120xf32> to vector<16x120xf32>
    %5 = arith.addf %2, %4 : vector<16x120xf32>
    %cst_5 = arith.constant 0.000000e+00 : f32
    %6 = vector.broadcast %cst_5 : f32 to vector<16x120xf32>
    %7 = arith.maximumf %5, %6 : vector<16x120xf32>
    %8 = arith.truncf %7 : vector<16x120xf32> to vector<16x120xbf16>
    %c0_6 = arith.constant 0 : index
    %c0_7 = arith.constant 0 : index
    %9 = vector.load %arg4[%c0_6, %c0_7] : memref<120x84xbf16, #tpu.memory_space<vmem>>, vector<120x84xbf16>
    %cst_8 = arith.constant dense<0.000000e+00> : vector<16x84xf32>
    %10 = tpu.matmul %8, %9, %cst_8 {dimension_numbers = #tpu.dot_dimension_numbers<[1], [0], [0], [1], [0, 0, 1, 1], [], []>} : vector<16x120xbf16>, vector<120x84xbf16>, vector<16x84xf32> -> vector<16x84xf32>
    %c0_9 = arith.constant 0 : index
    %c0_10 = arith.constant 0 : index
    %11 = vector.load %arg5[%c0_9, %c0_10] : memref<1x84xf32, #tpu.memory_space<vmem>>, vector<1x84xf32>
    %12 = vector.broadcast %11 : vector<1x84xf32> to vector<16x84xf32>
    %13 = arith.addf %10, %12 : vector<16x84xf32>
    %cst_11 = arith.constant 0.000000e+00 : f32
    %14 = vector.broadcast %cst_11 : f32 to vector<16x84xf32>
    %15 = arith.maximumf %13, %14 : vector<16x84xf32>
    %16 = arith.truncf %15 : vector<16x84xf32> to vector<16x84xbf16>
    %c0_12 = arith.constant 0 : index
    %c0_13 = arith.constant 0 : index
    %17 = vector.load %arg6[%c0_12, %c0_13] : memref<84x2xbf16, #tpu.memory_space<vmem>>, vector<84x2xbf16>
    %cst_14 = arith.constant dense<0.000000e+00> : vector<16x2xf32>
    %18 = tpu.matmul %16, %17, %cst_14 {dimension_numbers = #tpu.dot_dimension_numbers<[1], [0], [0], [1], [0, 0, 1, 1], [], []>} : vector<16x84xbf16>, vector<84x2xbf16>, vector<16x2xf32> -> vector<16x2xf32>
    %c0_15 = arith.constant 0 : index
    %c0_16 = arith.constant 0 : index
    %19 = vector.load %arg7[%c0_15, %c0_16] : memref<1x2xf32, #tpu.memory_space<vmem>>, vector<1x2xf32>
    %20 = vector.broadcast %19 : vector<1x2xf32> to vector<16x2xf32>
    %21 = arith.addf %18, %20 : vector<16x2xf32>
    %c0_17 = arith.constant 0 : index
    %c0_18 = arith.constant 0 : index
    %22 = vector.load %arg8[%c0_17, %c0_18] : memref<16x2xf32, #tpu.memory_space<vmem>>, vector<16x2xf32>
    tpu.vector_store %arg8[%c0_17, %c0_18], %21 {strides = array<i32>} : memref<16x2xf32, #tpu.memory_space<vmem>>, vector<16x2xf32>,
    return
  }
  func.func @transform_0(%arg0: i32) -> (i32, i32) {
    %c0_i32 = arith.constant 0 : i32
    %c0_i32_0 = arith.constant 0 : i32
    return %arg0, %c0_i32 : i32, i32
  }
  func.func @transform_1(%arg0: i32) -> (i32, i32) {
    %c0_i32 = arith.constant 0 : i32
    %c0_i32_0 = arith.constant 0 : i32
    %c0_i32_1 = arith.constant 0 : i32
    return %c0_i32, %c0_i32_0 : i32, i32
  }
  func.func @transform_2(%arg0: i32) -> (i32, i32) {
    %c0_i32 = arith.constant 0 : i32
    %c0_i32_0 = arith.constant 0 : i32
    %c0_i32_1 = arith.constant 0 : i32
    return %c0_i32, %c0_i32_0 : i32, i32
  }
  func.func @transform_3(%arg0: i32) -> (i32, i32) {
    %c0_i32 = arith.constant 0 : i32
    %c0_i32_0 = arith.constant 0 : i32
    %c0_i32_1 = arith.constant 0 : i32
    return %c0_i32, %c0_i32_0 : i32, i32
  }
  func.func @transform_4(%arg0: i32) -> (i32, i32) {
    %c0_i32 = arith.constant 0 : i32
    %c0_i32_0 = arith.constant 0 : i32
    %c0_i32_1 = arith.constant 0 : i32
    return %c0_i32, %c0_i32_0 : i32, i32
  }
  func.func @transform_5(%arg0: i32) -> (i32, i32) {
    %c0_i32 = arith.constant 0 : i32
    %c0_i32_0 = arith.constant 0 : i32
    %c0_i32_1 = arith.constant 0 : i32
    return %c0_i32, %c0_i32_0 : i32, i32
  }
  func.func @transform_6(%arg0: i32) -> (i32, i32) {
    %c0_i32 = arith.constant 0 : i32
    %c0_i32_0 = arith.constant 0 : i32
    %c0_i32_1 = arith.constant 0 : i32
    return %c0_i32, %c0_i32_0 : i32, i32
  }
  func.func @transform_7(%arg0: i32) -> (i32, i32) {
    %c0_i32 = arith.constant 0 : i32
    %c0_i32_0 = arith.constant 0 : i32
    return %arg0, %c0_i32 : i32, i32
  }
}

</mosaic_0001>

<llo_original>
// kernel: forward.3
$region0: #{forward.3}
  #allocation0 [shape = 'u32[]', space=smem, size = 0x4, offset = 0x4, fixed_abs, tag = 'smem constant byte address 0x4 - core index']
  #allocation1 [shape = 'u32[144,128]{1,0:T(1,128)}', space=vmem, size = 0x12000, scoped, tag = 'internal scratch']
  %s0 = inlined_call_operand.vmem [shape: bf16[2048,25], index: 0, kind: input, shape index: {}]
  %s1 = inlined_call_operand.vmem [shape: bf16[25,6], index: 1, kind: input, shape index: {}]
  %s2 = inlined_call_operand.vmem [shape: f32[1,6], index: 2, kind: input, shape index: {}]
  %s3 = inlined_call_operand.vmem [shape: bf16[2048,6], index: 3, kind: output, shape index: {}]
  %s4 = sld [smem:[#allocation0]]
  $region45: #{forward.3} parent=0
    _
  %s6 = ssub.s32 1, %s4
  %s7 = scalar_select 0, %s6, %s4
  loop: start=0, step=1, limit=6
  $region2: #{forward.3} parent=0 // loop_pre_header
    _
  $region3: #{forward.3} parent=0 // loop_header
    %s9 = sphi 0, %s13
    %p10 = scmp.ge.s32.totalorder %s9, 6
    %s19 = sphi 0, %s21
    %s22 = sphi 0, %s19
    %s23 = sphi 0, %s22
    %s39 = sphi 0, %s23
    %s43 = sphi 0, %s43
    %s45 = sphi 0, %s43
    %s46 = sphi 0, %s45
    %s60 = sphi 0, %s46
    %s64 = sphi 0, %s64
    %s66 = sphi 0, %s64
    %s67 = sphi 0, %s66
    %s81 = sphi 0, %s67
    %s87 = sphi 0, %s89
    %s90 = sphi 0, %s87
    %s91 = sphi 0, %s90
    %s107 = sphi 0, %s91
  $region4: #{forward.3} parent=0 // loop_header_branch
    %12 = sbr.rel (%p10) target = $region8
  $region5: #{forward.3} parent=0 // loop_body
    %s14 = ssub.s32 %s9, 1
    %s15 = ssub.s32 %s9, 2
    %s16 = sadd.s32 %s9, 1
    %s17 = ssub.s32 %s9, %s16
    %p18 = scmp.eq.s32.totalorder %s17, 0
    %s20 = sadd.s32 %s19, 1
    %s21 = scalar_select %p18, %s19, %s20
    %p24 = pneg %p18
    %p25 = scmp.eq.s32.totalorder %s9, 3
    %p26 = por %p24, %p25
    %p27 = scmp.ne.s32.totalorder %s19, %s22
    %p28 = scmp.eq.s32.totalorder %s9, 0
    %p29 = por %p27, %p28
    %p30 = scmp.ne.s32.totalorder %s19, %s22
    %p31 = scmp.eq.s32.totalorder %s14, 3
    %p32 = por %p30, %p31
    %p33 = scmp.ne.s32.totalorder %s22, %s23
    %p34 = scmp.eq.s32.totalorder %s14, 0
    %p35 = por %p33, %p34
    %p36 = scmp.ne.s32.totalorder %s22, %s23
    %p37 = scmp.eq.s32.totalorder %s15, 3
    %p38 = por %p36, %p37
    %p40 = scmp.ne.s32.totalorder %s23, %s39
    %p41 = scmp.eq.s32.totalorder %s15, 0
    %p42 = por %p40, %p41
    %s44 = sadd.s32 %s43, 1
    %p47 = scmp.eq.s32.totalorder %s9, 3
    %p48 = scmp.ne.s32.totalorder %s43, %s45
    %p49 = scmp.eq.s32.totalorder %s9, 0
    %p50 = por %p48, %p49
    %p51 = scmp.ne.s32.totalorder %s43, %s45
    %p52 = scmp.eq.s32.totalorder %s14, 3
    %p53 = por %p51, %p52
    %p54 = scmp.ne.s32.totalorder %s45, %s46
    %p55 = scmp.eq.s32.totalorder %s14, 0
    %p56 = por %p54, %p55
    %p57 = scmp.ne.s32.totalorder %s45, %s46
    %p58 = scmp.eq.s32.totalorder %s15, 3
    %p59 = por %p57, %p58
    %p61 = scmp.ne.s32.totalorder %s46, %s60
    %p62 = scmp.eq.s32.totalorder %s15, 0
    %p63 = por %p61, %p62
    %s65 = sadd.s32 %s64, 1
    %p68 = scmp.eq.s32.totalorder %s9, 3
    %p69 = scmp.ne.s32.totalorder %s64, %s66
    %p70 = scmp.eq.s32.totalorder %s9, 0
    %p71 = por %p69, %p70
    %p72 = scmp.ne.s32.totalorder %s64, %s66
    %p73 = scmp.eq.s32.totalorder %s14, 3
    %p74 = por %p72, %p73
    %p75 = scmp.ne.s32.totalorder %s66, %s67
    %p76 = scmp.eq.s32.totalorder %s14, 0
    %p77 = por %p75, %p76
    %p78 = scmp.ne.s32.totalorder %s66, %s67
    %p79 = scmp.eq.s32.totalorder %s15, 3
    %p80 = por %p78, %p79
    %p82 = scmp.ne.s32.totalorder %s67, %s81
    %p83 = scmp.eq.s32.totalorder %s15, 0
    %p84 = por %p82, %p83
    %s85 = ssub.s32 %s9, %s16
    %p86 = scmp.eq.s32.totalorder %s85, 0
    %s88 = sadd.s32 %s87, 1
    %s89 = scalar_select %p86, %s87, %s88
    %p92 = pneg %p86
    %p93 = scmp.eq.s32.totalorder %s9, 3
    %p94 = por %p92, %p93
    %p95 = scmp.ne.s32.totalorder %s87, %s90
    %p96 = scmp.eq.s32.totalorder %s9, 0
    %p97 = por %p95, %p96
    %p98 = scmp.ne.s32.totalorder %s87, %s90
    %p99 = scmp.eq.s32.totalorder %s14, 3
    %p100 = por %p98, %p99
    %p101 = scmp.ne.s32.totalorder %s90, %s91
    %p102 = scmp.eq.s32.totalorder %s14, 0
    %p103 = por %p101, %p102
    %p104 = scmp.ne.s32.totalorder %s90, %s91
    %p105 = scmp.eq.s32.totalorder %s15, 3
    %p106 = por %p104, %p105
    %p108 = scmp.ne.s32.totalorder %s91, %s107
    %p109 = scmp.eq.s32.totalorder %s15, 0
    %p110 = por %p108, %p109
    %p111 = scmp.le.s32.totalorder 1, %s9
    %p112 = scmp.lt.s32.totalorder %s9, 5
    %p113 = pnand %p111, %p112
    %p114 = pneg %p113
    // Predicated region
    $region9: #{forward.3} parent=5 // pred_check
      _
    $region10: #{forward.3} parent=5 // pred_check_branch
      %116 = sbr.rel (%p113) target = $region12
    $region11: #{forward.3} parent=5 // pred_region
      %s117 = ssub.s32 %s9, 1
      // Predicated region
      $region13: #{forward.3} parent=11 // pred_check
        %p118 = pneg %p56
      $region14: #{forward.3} parent=11 // pred_check_branch
        %120 = sbr.rel (%p118) target = $region16
      $region15: #{forward.3} parent=11 // pred_region
        _
      $region16: #{forward.3} parent=11 // pred_fallthru
        _
      // Predicated region
      $region17: #{forward.3} parent=11 // pred_check
        %p121 = pneg %p77
      $region18: #{forward.3} parent=11 // pred_check_branch
        %123 = sbr.rel (%p121) target = $region20
      $region19: #{forward.3} parent=11 // pred_region
        _
      $region20: #{forward.3} parent=11 // pred_fallthru
        _
    $region12: #{forward.3} parent=5 // pred_fallthru
      _
    %p124 = scmp.lt.s32.totalorder %s9, 4
    // Predicated region
    $region21: #{forward.3} parent=5 // pred_check
      %p125 = pneg %p124
    $region22: #{forward.3} parent=5 // pred_check_branch
      %127 = sbr.rel (%p125) target = $region24
    $region23: #{forward.3} parent=5 // pred_region
      // Predicated region
      $region25: #{forward.3} parent=23 // pred_check
        %p128 = pneg %p29
      $region26: #{forward.3} parent=23 // pred_check_branch
        %130 = sbr.rel (%p128) target = $region28
      $region27: #{forward.3} parent=23 // pred_region
        %s131 = smul.u32 64, %s9
        %p132 = scmp.lt.s32.totalorder %s131, 255
        %s133 = scalar_select %p132, %s131, 255
        %s134 = smul.addr %s133, 4
        %s135 = scalar_lea.vmem %s0, %s134
        %s136 = smul.u32 64, %s9
      $region28: #{forward.3} parent=23 // pred_fallthru
        _
    $region24: #{forward.3} parent=5 // pred_fallthru
      _
    %p137 = scmp.le.s32.totalorder 1, %s9
    %p138 = scmp.lt.s32.totalorder %s9, 5
    %p139 = pnand %p137, %p138
    %p140 = pneg %p139
    // Predicated region
    $region29: #{forward.3} parent=5 // pred_check
      _
    $region30: #{forward.3} parent=5 // pred_check_branch
      %142 = sbr.rel (%p139) target = $region32
    $region31: #{forward.3} parent=5 // pred_region
      %s143 = ssub.s32 %s9, 1
      %s144 = smul.u32 64, %s14
      %p145 = scmp.lt.s32.totalorder %s144, 255
      %s146 = scalar_select %p145, %s144, 255
      %s147 = smul.addr %s146, 4
      %s148 = scalar_lea.vmem %s0, %s147
      %p149 = pneg %p35
      %p150 = pneg %p32
      %p151 = pneg %p56
      %p152 = pneg %p53
      %p153 = pneg %p77
      %p154 = pneg %p74
      %p155 = pneg %p103
      %p156 = pneg %p100
      %s157 = smul.u32 64, %s14
      %p158 = scmp.lt.s32.totalorder %s157, 255
      %s159 = scalar_select %p158, %s157, 255
      %s160 = smul.addr %s159, 4
      %s161 = scalar_lea.vmem %s3, %s160
      %s162 = smul.u32 64, %s14
      %p163 = scmp.lt.s32.totalorder %s162, 255
      %s164 = scalar_select %p163, %s162, 255
      %s165 = smul.addr %s164, 4
      %s166 = scalar_lea.vmem %s0, %s165
      %s167 = smul.u32 64, %s14
      %s168 = smul.u32 64, %s14
      %p169 = scmp.lt.s32.totalorder %s168, 255
      %s170 = scalar_select %p169, %s168, 255
      %s171 = smul.addr %s170, 4
      %s172 = scalar_lea.vmem %s3, %s171
      %s173 = smul.u32 64, %s14
      %v175 = vld [vmem:[%s166] sm:$0xf]
      %v176 = vld [vmem:[%s166 + $0x4] sm:$0xf]
      %v177 = vld [vmem:[%s166 + $0x8] sm:$0xf]
      %v178 = vld [vmem:[%s166 + $0xc] sm:$0xf]
      %v179 = vld [vmem:[%s166 + $0x10] sm:$0xf]
      %v180 = vld [vmem:[%s166 + $0x14] sm:$0xf]
      %v181 = vld [vmem:[%s166 + $0x18] sm:$0xf]
      %v182 = vld [vmem:[%s166 + $0x1c] sm:$0xf]
      %v183 = vld [vmem:[%s166 + $0x20] sm:$0xf]
      %v184 = vld [vmem:[%s166 + $0x24] sm:$0xf]
      %v185 = vld [vmem:[%s166 + $0x28] sm:$0xf]
      %v186 = vld [vmem:[%s166 + $0x2c] sm:$0xf]
      %v187 = vld [vmem:[%s166 + $0x30] sm:$0xf]
      %v188 = vld [vmem:[%s166 + $0x34] sm:$0xf]
      %v189 = vld [vmem:[%s166 + $0x38] sm:$0xf]
      %v190 = vld [vmem:[%s166 + $0x3c] sm:$0xf]
      %v191 = vld [vmem:[%s166 + $0x40] sm:$0xf]
      %v192 = vld [vmem:[%s166 + $0x44] sm:$0xf]
      %v193 = vld [vmem:[%s166 + $0x48] sm:$0xf]
      %v194 = vld [vmem:[%s166 + $0x4c] sm:$0xf]
      %v195 = vld [vmem:[%s166 + $0x50] sm:$0xf]
      %v196 = vld [vmem:[%s166 + $0x54] sm:$0xf]
      %v197 = vld [vmem:[%s166 + $0x58] sm:$0xf]
      %v198 = vld [vmem:[%s166 + $0x5c] sm:$0xf]
      %v199 = vld [vmem:[%s166 + $0x60] sm:$0xf]
      %v200 = vld [vmem:[%s166 + $0x64] sm:$0xf]
      %v201 = vld [vmem:[%s166 + $0x68] sm:$0xf]
      %v202 = vld [vmem:[%s166 + $0x6c] sm:$0xf]
      %v203 = vld [vmem:[%s166 + $0x70] sm:$0xf]
      %v204 = vld [vmem:[%s166 + $0x74] sm:$0xf]
      %v205 = vld [vmem:[%s166 + $0x78] sm:$0xf]
      %v206 = vld [vmem:[%s166 + $0x7c] sm:$0xf]
      %v207 = vld [vmem:[%s166 + $0x80] sm:$0xf]
      %v208 = vld [vmem:[%s166 + $0x84] sm:$0xf]
      %v209 = vld [vmem:[%s166 + $0x88] sm:$0xf]
      %v210 = vld [vmem:[%s166 + $0x8c] sm:$0xf]
      %v211 = vld [vmem:[%s166 + $0x90] sm:$0xf]
      %v212 = vld [vmem:[%s166 + $0x94] sm:$0xf]
      %v213 = vld [vmem:[%s166 + $0x98] sm:$0xf]
      %v214 = vld [vmem:[%s166 + $0x9c] sm:$0xf]
      %v215 = vld [vmem:[%s166 + $0xa0] sm:$0xf]
      %v216 = vld [vmem:[%s166 + $0xa4] sm:$0xf]
      %v217 = vld [vmem:[%s166 + $0xa8] sm:$0xf]
      %v218 = vld [vmem:[%s166 + $0xac] sm:$0xf]
      %v219 = vld [vmem:[%s166 + $0xb0] sm:$0xf]
      %v220 = vld [vmem:[%s166 + $0xb4] sm:$0xf]
      %v221 = vld [vmem:[%s166 + $0xb8] sm:$0xf]
      %v222 = vld [vmem:[%s166 + $0xbc] sm:$0xf]
      %v223 = vld [vmem:[%s166 + $0xc0] sm:$0xf]
      %v224 = vld [vmem:[%s166 + $0xc4] sm:$0xf]
      %v225 = vld [vmem:[%s166 + $0xc8] sm:$0xf]
      %v226 = vld [vmem:[%s166 + $0xcc] sm:$0xf]
      %v227 = vld [vmem:[%s166 + $0xd0] sm:$0xf]
      %v228 = vld [vmem:[%s166 + $0xd4] sm:$0xf]
      %v229 = vld [vmem:[%s166 + $0xd8] sm:$0xf]
      %v230 = vld [vmem:[%s166 + $0xdc] sm:$0xf]
      %v231 = vld [vmem:[%s166 + $0xe0] sm:$0xf]
      %v232 = vld [vmem:[%s166 + $0xe4] sm:$0xf]
      %v233 = vld [vmem:[%s166 + $0xe8] sm:$0xf]
      %v234 = vld [vmem:[%s166 + $0xec] sm:$0xf]
      %v235 = vld [vmem:[%s166 + $0xf0] sm:$0xf]
      %v236 = vld [vmem:[%s166 + $0xf4] sm:$0xf]
      %v237 = vld [vmem:[%s166 + $0xf8] sm:$0xf]
      %v238 = vld [vmem:[%s166 + $0xfc] sm:$0xf]
      %v239 = vld [vmem:[%s1] sm:$0xf]
      %v240 = vld [vmem:[%s1 + $0x4] sm:$0xf]
      %v241 = vld [vmem:[%s1 + $0x8] sm:$0xf]
      %v242 = vld [vmem:[%s1 + $0xc] sm:$0x1]
      %v243 = vld [vmem:[%s2] sm:$0x1]
      %v245 = vlaneseq
      %v246 = vshrl.u32 %v245, 7
      %v247 = vsub.s32 0, %v246
      %v248 = vrot.slane %v243, %v247
      %v314 = vunpack.c.l.b16 %v175
      %v315 = vunpack.c.l.b16 %v176
      %v316 = vunpack.c.l.b16 %v177
      %v317 = vunpack.c.l.b16 %v178
      %v318 = vunpack.c.l.b16 %v179
      %v319 = vunpack.c.l.b16 %v180
      %v320 = vunpack.c.l.b16 %v181
      %v321 = vunpack.c.l.b16 %v182
      %v322 = vunpack.c.l.b16 %v183
      %v323 = vunpack.c.l.b16 %v184
      %v324 = vunpack.c.l.b16 %v185
      %v325 = vunpack.c.l.b16 %v186
      %v326 = vunpack.c.l.b16 %v187
      %v327 = vunpack.c.l.b16 %v188
      %v328 = vunpack.c.l.b16 %v189
      %v329 = vunpack.c.l.b16 %v190
      %v330 = vunpack.c.l.b16 %v191
      %v331 = vunpack.c.l.b16 %v192
      %v332 = vunpack.c.l.b16 %v193
      %v333 = vunpack.c.l.b16 %v194
      %v334 = vunpack.c.l.b16 %v195
      %v335 = vunpack.c.l.b16 %v196
      %v336 = vunpack.c.l.b16 %v197
      %v337 = vunpack.c.l.b16 %v198
      %v338 = vunpack.c.l.b16 %v199
      %v339 = vunpack.c.l.b16 %v200
      %v340 = vunpack.c.l.b16 %v201
      %v341 = vunpack.c.l.b16 %v202
      %v342 = vunpack.c.l.b16 %v203
      %v343 = vunpack.c.l.b16 %v204
      %v344 = vunpack.c.l.b16 %v205
      %v345 = vunpack.c.l.b16 %v206
      %v346 = vunpack.c.l.b16 %v207
      %v347 = vunpack.c.l.b16 %v208
      %v348 = vunpack.c.l.b16 %v209
      %v349 = vunpack.c.l.b16 %v210
      %v350 = vunpack.c.l.b16 %v211
      %v351 = vunpack.c.l.b16 %v212
      %v352 = vunpack.c.l.b16 %v213
      %v353 = vunpack.c.l.b16 %v214
      %v354 = vunpack.c.l.b16 %v215
      %v355 = vunpack.c.l.b16 %v216
      %v356 = vunpack.c.l.b16 %v217
      %v357 = vunpack.c.l.b16 %v218
      %v358 = vunpack.c.l.b16 %v219
      %v359 = vunpack.c.l.b16 %v220
      %v360 = vunpack.c.l.b16 %v221
      %v361 = vunpack.c.l.b16 %v222
      %v362 = vunpack.c.l.b16 %v223
      %v363 = vunpack.c.l.b16 %v224
      %v364 = vunpack.c.l.b16 %v225
      %v365 = vunpack.c.l.b16 %v226
      %v366 = vunpack.c.l.b16 %v227
      %v367 = vunpack.c.l.b16 %v228
      %v368 = vunpack.c.l.b16 %v229
      %v369 = vunpack.c.l.b16 %v230
      %v370 = vunpack.c.l.b16 %v231
      %v371 = vunpack.c.l.b16 %v232
      %v372 = vunpack.c.l.b16 %v233
      %v373 = vunpack.c.l.b16 %v234
      %v374 = vunpack.c.l.b16 %v235
      %v375 = vunpack.c.l.b16 %v236
      %v376 = vunpack.c.l.b16 %v237
      %v377 = vunpack.c.l.b16 %v238
      %v378 = vpack.c.b16 %v315, %v314
      %v379 = vpack.c.b16 %v317, %v316
      %v380 = vpack.c.b16 %v319, %v318
      %v381 = vpack.c.b16 %v321, %v320
      %v382 = vpack.c.b16 %v323, %v322
      %v383 = vpack.c.b16 %v325, %v324
      %v384 = vpack.c.b16 %v327, %v326
      %v385 = vpack.c.b16 %v329, %v328
      %v386 = vpack.c.b16 %v331, %v330
      %v387 = vpack.c.b16 %v333, %v332
      %v388 = vpack.c.b16 %v335, %v334
      %v389 = vpack.c.b16 %v337, %v336
      %v390 = vpack.c.b16 %v339, %v338
      %v391 = vpack.c.b16 %v341, %v340
      %v392 = vpack.c.b16 %v343, %v342
      %v393 = vpack.c.b16 %v345, %v344
      %v394 = vpack.c.b16 %v347, %v346
      %v395 = vpack.c.b16 %v349, %v348
      %v396 = vpack.c.b16 %v351, %v350
      %v397 = vpack.c.b16 %v353, %v352
      %v398 = vpack.c.b16 %v355, %v354
      %v399 = vpack.c.b16 %v357, %v356
      %v400 = vpack.c.b16 %v359, %v358
      %v401 = vpack.c.b16 %v361, %v360
      %v402 = vpack.c.b16 %v363, %v362
      %v403 = vpack.c.b16 %v365, %v364
      %v404 = vpack.c.b16 %v367, %v366
      %v405 = vpack.c.b16 %v369, %v368
      %v406 = vpack.c.b16 %v371, %v370
      %v407 = vpack.c.b16 %v373, %v372
      %v408 = vpack.c.b16 %v375, %v374
      %v409 = vpack.c.b16 %v377, %v376
      %v414 = vunpack.c.l.b16 %v239
      %v415 = vunpack.c.l.b16 %v240
      %v416 = vunpack.c.l.b16 %v241
      %v417 = vunpack.c.l.b16 %v242
      %v418 = vpack.c.b16 %v415, %v414
      %v419 = vpack.c.b16 %v417, %v416
      %vm421 = vcmask 203776
      %v423 = vsel %vm421, %v378, 0
      %v426 = vsel %vm421, %v379, 0
      %v429 = vsel %vm421, %v380, 0
      %v432 = vsel %vm421, %v381, 0
      %v435 = vsel %vm421, %v382, 0
      %v438 = vsel %vm421, %v383, 0
      %v441 = vsel %vm421, %v384, 0
      %v444 = vsel %vm421, %v385, 0
      %v447 = vsel %vm421, %v386, 0
      %v450 = vsel %vm421, %v387, 0
      %v453 = vsel %vm421, %v388, 0
      %v456 = vsel %vm421, %v389, 0
      %v459 = vsel %vm421, %v390, 0
      %v462 = vsel %vm421, %v391, 0
      %v465 = vsel %vm421, %v392, 0
      %v468 = vsel %vm421, %v393, 0
      %v471 = vsel %vm421, %v394, 0
      %v474 = vsel %vm421, %v395, 0
      %v477 = vsel %vm421, %v396, 0
      %v480 = vsel %vm421, %v397, 0
      %v483 = vsel %vm421, %v398, 0
      %v486 = vsel %vm421, %v399, 0
      %v489 = vsel %vm421, %v400, 0
      %v492 = vsel %vm421, %v401, 0
      %v495 = vsel %vm421, %v402, 0
      %v498 = vsel %vm421, %v403, 0
      %v501 = vsel %vm421, %v404, 0
      %v504 = vsel %vm421, %v405, 0
      %v507 = vsel %vm421, %v406, 0
      %v510 = vsel %vm421, %v407, 0
      %v513 = vsel %vm421, %v408, 0
      %v516 = vsel %vm421, %v409, 0
      %vm518 = vcmask 1043456
      %vm519 = vcmask 1044480
      %v520 = vsel %vm518, 4294967295, 65535
      %v521 = vsel %vm519, %v520, 0
      %v523 = vand.u32 %v419, %v521
      %525 = vmatprep.subr.bf16.mxu0 0
      %526 = vmatpush1.bf16.msra.mxu0 %v418
      %527 = vmatprep.subr.bf16.mxu0 0
      %528 = vmatpush1.bf16.msra.mxu0 %v523
      %529 = vmatprep.subr.bf16.mxu0 0
      %530 = vmatpush1.bf16.msra.mxu0 0
      %531 = vmatprep.subr.bf16.mxu0 0
      %532 = vmatpush1.bf16.msra.mxu0 0
      %533 = vmatprep.subr.bf16.mxu0 0
      %534 = vmatpush1.bf16.msra.mxu0 0
      %535 = vmatprep.subr.bf16.mxu0 0
      %536 = vmatpush1.bf16.msra.mxu0 0
      %537 = vmatprep.subr.bf16.mxu0 0
      %538 = vmatpush1.bf16.msra.mxu0 0
      %539 = vmatprep.subr.bf16.mxu0 0
      %540 = vmatpush1.bf16.msra.mxu0 0
      %541 = vmatprep.subr.bf16.mxu0 0
      %542 = vmatpush1.bf16.msra.mxu0 0
      %543 = vmatprep.subr.bf16.mxu0 0
      %544 = vmatpush1.bf16.msra.mxu0 0
      %545 = vmatprep.subr.bf16.mxu0 0
      %546 = vmatpush1.bf16.msra.mxu0 0
      %547 = vmatprep.subr.bf16.mxu0 0
      %548 = vmatpush1.bf16.msra.mxu0 0
      %549 = vmatprep.subr.bf16.mxu0 0
      %550 = vmatpush1.bf16.msra.mxu0 0
      %551 = vmatprep.subr.bf16.mxu0 0
      %552 = vmatpush1.bf16.msra.mxu0 0
      %553 = vmatprep.subr.bf16.mxu0 0
      %554 = vmatpush1.bf16.msra.mxu0 0
      %555 = vmatprep.subr.bf16.mxu0 0
      %556 = vmatpush1.bf16.msra.mxu0 0
      %557 = vmatprep.mubr.bf16.mxu0 0
      %558 = vmatmul.mubr.bf16.gmra.mrb[0].mxu0 %v423
      %v559 = vpop.f32.mrb[0].mxu0
      %v560 = vadd.f32 %v248, %v559
      %v561 = vpop.f32.mrb[0].mxu0
      %v562 = vpop.f32.mrb[0].mxu0
      %v563 = vadd.f32 %v248, %v562
      %v564 = vpop.f32.mrb[0].mxu0
      %565 = vmatprep.mubr.bf16.mxu0 0
      %566 = vmatmul.mubr.bf16.gmra.mrb[0].mxu0 %v426
      %v567 = vpop.f32.mrb[0].mxu0
      %v568 = vadd.f32 %v248, %v567
      %v569 = vpop.f32.mrb[0].mxu0
      %v570 = vpop.f32.mrb[0].mxu0
      %v571 = vadd.f32 %v248, %v570
      %v572 = vpop.f32.mrb[0].mxu0
      %573 = vmatprep.mubr.bf16.mxu0 0
      %574 = vmatmul.mubr.bf16.gmra.mrb[0].mxu0 %v429
      %v575 = vpop.f32.mrb[0].mxu0
      %v576 = vadd.f32 %v248, %v575
      %v577 = vpop.f32.mrb[0].mxu0
      %v578 = vpop.f32.mrb[0].mxu0
      %v579 = vadd.f32 %v248, %v578
      %v580 = vpop.f32.mrb[0].mxu0
      %581 = vmatprep.mubr.bf16.mxu0 0
      %582 = vmatmul.mubr.bf16.gmra.mrb[0].mxu0 %v432
      %v583 = vpop.f32.mrb[0].mxu0
      %v584 = vadd.f32 %v248, %v583
      %v585 = vpop.f32.mrb[0].mxu0
      %v586 = vpop.f32.mrb[0].mxu0
      %v587 = vadd.f32 %v248, %v586
      %v588 = vpop.f32.mrb[0].mxu0
      %589 = vmatprep.mubr.bf16.mxu0 0
      %590 = vmatmul.mubr.bf16.gmra.mrb[0].mxu0 %v435
      %v591 = vpop.f32.mrb[0].mxu0
      %v592 = vadd.f32 %v248, %v591
      %v593 = vpop.f32.mrb[0].mxu0
      %v594 = vpop.f32.mrb[0].mxu0
      %v595 = vadd.f32 %v248, %v594
      %v596 = vpop.f32.mrb[0].mxu0
      %597 = vmatprep.mubr.bf16.mxu0 0
      %598 = vmatmul.mubr.bf16.gmra.mrb[0].mxu0 %v438
      %v599 = vpop.f32.mrb[0].mxu0
      %v600 = vadd.f32 %v248, %v599
      %v601 = vpop.f32.mrb[0].mxu0
      %v602 = vpop.f32.mrb[0].mxu0
      %v603 = vadd.f32 %v248, %v602
      %v604 = vpop.f32.mrb[0].mxu0
      %605 = vmatprep.mubr.bf16.mxu0 0
      %606 = vmatmul.mubr.bf16.gmra.mrb[0].mxu0 %v441
      %v607 = vpop.f32.mrb[0].mxu0
      %v608 = vadd.f32 %v248, %v607
      %v609 = vpop.f32.mrb[0].mxu0
      %v610 = vpop.f32.mrb[0].mxu0
      %v611 = vadd.f32 %v248, %v610
      %v612 = vpop.f32.mrb[0].mxu0
      %613 = vmatprep.mubr.bf16.mxu0 0
      %614 = vmatmul.mubr.bf16.gmra.mrb[0].mxu0 %v444
      %v615 = vpop.f32.mrb[0].mxu0
      %v616 = vadd.f32 %v248, %v615
      %v617 = vpop.f32.mrb[0].mxu0
      %v618 = vpop.f32.mrb[0].mxu0
      %v619 = vadd.f32 %v248, %v618
      %v620 = vpop.f32.mrb[0].mxu0
      %621 = vmatprep.mubr.bf16.mxu0 0
      %622 = vmatmul.mubr.bf16.gmra.mrb[0].mxu0 %v447
      %v623 = vpop.f32.mrb[0].mxu0
      %v624 = vadd.f32 %v248, %v623
      %v625 = vpop.f32.mrb[0].mxu0
      %v626 = vpop.f32.mrb[0].mxu0
      %v627 = vadd.f32 %v248, %v626
      %v628 = vpop.f32.mrb[0].mxu0
      %629 = vmatprep.mubr.bf16.mxu0 0
      %630 = vmatmul.mubr.bf16.gmra.mrb[0].mxu0 %v450
      %v631 = vpop.f32.mrb[0].mxu0
      %v632 = vadd.f32 %v248, %v631
      %v633 = vpop.f32.mrb[0].mxu0
      %v634 = vpop.f32.mrb[0].mxu0
      %v635 = vadd.f32 %v248, %v634
      %v636 = vpop.f32.mrb[0].mxu0
      %637 = vmatprep.mubr.bf16.mxu0 0
      %638 = vmatmul.mubr.bf16.gmra.mrb[0].mxu0 %v453
      %v639 = vpop.f32.mrb[0].mxu0
      %v640 = vadd.f32 %v248, %v639
      %v641 = vpop.f32.mrb[0].mxu0
      %v642 = vpop.f32.mrb[0].mxu0
      %v643 = vadd.f32 %v248, %v642
      %v644 = vpop.f32.mrb[0].mxu0
      %645 = vmatprep.mubr.bf16.mxu0 0
      %646 = vmatmul.mubr.bf16.gmra.mrb[0].mxu0 %v456
      %v647 = vpop.f32.mrb[0].mxu0
      %v648 = vadd.f32 %v248, %v647
      %v649 = vpop.f32.mrb[0].mxu0
      %v650 = vpop.f32.mrb[0].mxu0
      %v651 = vadd.f32 %v248, %v650
      %v652 = vpop.f32.mrb[0].mxu0
      %653 = vmatprep.mubr.bf16.mxu0 0
      %654 = vmatmul.mubr.bf16.gmra.mrb[0].mxu0 %v459
      %v655 = vpop.f32.mrb[0].mxu0
      %v656 = vadd.f32 %v248, %v655
      %v657 = vpop.f32.mrb[0].mxu0
      %v658 = vpop.f32.mrb[0].mxu0
      %v659 = vadd.f32 %v248, %v658
      %v660 = vpop.f32.mrb[0].mxu0
      %661 = vmatprep.mubr.bf16.mxu0 0
      %662 = vmatmul.mubr.bf16.gmra.mrb[0].mxu0 %v462
      %v663 = vpop.f32.mrb[0].mxu0
      %v664 = vadd.f32 %v248, %v663
      %v665 = vpop.f32.mrb[0].mxu0
      %v666 = vpop.f32.mrb[0].mxu0
      %v667 = vadd.f32 %v248, %v666
      %v668 = vpop.f32.mrb[0].mxu0
      %669 = vmatprep.mubr.bf16.mxu0 0
      %670 = vmatmul.mubr.bf16.gmra.mrb[0].mxu0 %v465
      %v671 = vpop.f32.mrb[0].mxu0
      %v672 = vadd.f32 %v248, %v671
      %v673 = vpop.f32.mrb[0].mxu0
      %v674 = vpop.f32.mrb[0].mxu0
      %v675 = vadd.f32 %v248, %v674
      %v676 = vpop.f32.mrb[0].mxu0
      %677 = vmatprep.mubr.bf16.mxu0 0
      %678 = vmatmul.mubr.bf16.gmra.mrb[0].mxu0 %v468
      %v679 = vpop.f32.mrb[0].mxu0
      %v680 = vadd.f32 %v248, %v679
      %v681 = vpop.f32.mrb[0].mxu0
      %v682 = vpop.f32.mrb[0].mxu0
      %v683 = vadd.f32 %v248, %v682
      %v684 = vpop.f32.mrb[0].mxu0
      %685 = vmatprep.mubr.bf16.mxu0 0
      %686 = vmatmul.mubr.bf16.gmra.mrb[0].mxu0 %v471
      %v687 = vpop.f32.mrb[0].mxu0
      %v688 = vadd.f32 %v248, %v687
      %v689 = vpop.f32.mrb[0].mxu0
      %v690 = vpop.f32.mrb[0].mxu0
      %v691 = vadd.f32 %v248, %v690
      %v692 = vpop.f32.mrb[0].mxu0
      %693 = vmatprep.mubr.bf16.mxu0 0
      %694 = vmatmul.mubr.bf16.gmra.mrb[0].mxu0 %v474
      %v695 = vpop.f32.mrb[0].mxu0
      %v696 = vadd.f32 %v248, %v695
      %v697 = vpop.f32.mrb[0].mxu0
      %v698 = vpop.f32.mrb[0].mxu0
      %v699 = vadd.f32 %v248, %v698
      %v700 = vpop.f32.mrb[0].mxu0
      %701 = vmatprep.mubr.bf16.mxu0 0
      %702 = vmatmul.mubr.bf16.gmra.mrb[0].mxu0 %v477
      %v703 = vpop.f32.mrb[0].mxu0
      %v704 = vadd.f32 %v248, %v703
      %v705 = vpop.f32.mrb[0].mxu0
      %v706 = vpop.f32.mrb[0].mxu0
      %v707 = vadd.f32 %v248, %v706
      %v708 = vpop.f32.mrb[0].mxu0
      %709 = vmatprep.mubr.bf16.mxu0 0
      %710 = vmatmul.mubr.bf16.gmra.mrb[0].mxu0 %v480
      %v711 = vpop.f32.mrb[0].mxu0
      %v712 = vadd.f32 %v248, %v711
      %v713 = vpop.f32.mrb[0].mxu0
      %v714 = vpop.f32.mrb[0].mxu0
      %v715 = vadd.f32 %v248, %v714
      %v716 = vpop.f32.mrb[0].mxu0
      %717 = vmatprep.mubr.bf16.mxu0 0
      %718 = vmatmul.mubr.bf16.gmra.mrb[0].mxu0 %v483
      %v719 = vpop.f32.mrb[0].mxu0
      %v720 = vadd.f32 %v248, %v719
      %v721 = vpop.f32.mrb[0].mxu0
      %v722 = vpop.f32.mrb[0].mxu0
      %v723 = vadd.f32 %v248, %v722
      %v724 = vpop.f32.mrb[0].mxu0
      %725 = vmatprep.mubr.bf16.mxu0 0
      %726 = vmatmul.mubr.bf16.gmra.mrb[0].mxu0 %v486
      %v727 = vpop.f32.mrb[0].mxu0
      %v728 = vadd.f32 %v248, %v727
      %v729 = vpop.f32.mrb[0].mxu0
      %v730 = vpop.f32.mrb[0].mxu0
      %v731 = vadd.f32 %v248, %v730
      %v732 = vpop.f32.mrb[0].mxu0
      %733 = vmatprep.mubr.bf16.mxu0 0
      %734 = vmatmul.mubr.bf16.gmra.mrb[0].mxu0 %v489
      %v735 = vpop.f32.mrb[0].mxu0
      %v736 = vadd.f32 %v248, %v735
      %v737 = vpop.f32.mrb[0].mxu0
      %v738 = vpop.f32.mrb[0].mxu0
      %v739 = vadd.f32 %v248, %v738
      %v740 = vpop.f32.mrb[0].mxu0
      %741 = vmatprep.mubr.bf16.mxu0 0
      %742 = vmatmul.mubr.bf16.gmra.mrb[0].mxu0 %v492
      %v743 = vpop.f32.mrb[0].mxu0
      %v744 = vadd.f32 %v248, %v743
      %v745 = vpop.f32.mrb[0].mxu0
      %v746 = vpop.f32.mrb[0].mxu0
      %v747 = vadd.f32 %v248, %v746
      %v748 = vpop.f32.mrb[0].mxu0
      %749 = vmatprep.mubr.bf16.mxu0 0
      %750 = vmatmul.mubr.bf16.gmra.mrb[0].mxu0 %v495
      %v751 = vpop.f32.mrb[0].mxu0
      %v752 = vadd.f32 %v248, %v751
      %v753 = vpop.f32.mrb[0].mxu0
      %v754 = vpop.f32.mrb[0].mxu0
      %v755 = vadd.f32 %v248, %v754
      %v756 = vpop.f32.mrb[0].mxu0
      %757 = vmatprep.mubr.bf16.mxu0 0
      %758 = vmatmul.mubr.bf16.gmra.mrb[0].mxu0 %v498
      %v759 = vpop.f32.mrb[0].mxu0
      %v760 = vadd.f32 %v248, %v759
      %v761 = vpop.f32.mrb[0].mxu0
      %v762 = vpop.f32.mrb[0].mxu0
      %v763 = vadd.f32 %v248, %v762
      %v764 = vpop.f32.mrb[0].mxu0
      %765 = vmatprep.mubr.bf16.mxu0 0
      %766 = vmatmul.mubr.bf16.gmra.mrb[0].mxu0 %v501
      %v767 = vpop.f32.mrb[0].mxu0
      %v768 = vadd.f32 %v248, %v767
      %v769 = vpop.f32.mrb[0].mxu0
      %v770 = vpop.f32.mrb[0].mxu0
      %v771 = vadd.f32 %v248, %v770
      %v772 = vpop.f32.mrb[0].mxu0
      %773 = vmatprep.mubr.bf16.mxu0 0
      %774 = vmatmul.mubr.bf16.gmra.mrb[0].mxu0 %v504
      %v775 = vpop.f32.mrb[0].mxu0
      %v776 = vadd.f32 %v248, %v775
      %v777 = vpop.f32.mrb[0].mxu0
      %v778 = vpop.f32.mrb[0].mxu0
      %v779 = vadd.f32 %v248, %v778
      %v780 = vpop.f32.mrb[0].mxu0
      %781 = vmatprep.mubr.bf16.mxu0 0
      %782 = vmatmul.mubr.bf16.gmra.mrb[0].mxu0 %v507
      %v783 = vpop.f32.mrb[0].mxu0
      %v784 = vadd.f32 %v248, %v783
      %v785 = vpop.f32.mrb[0].mxu0
      %v786 = vpop.f32.mrb[0].mxu0
      %v787 = vadd.f32 %v248, %v786
      %v788 = vpop.f32.mrb[0].mxu0
      %789 = vmatprep.mubr.bf16.mxu0 0
      %790 = vmatmul.mubr.bf16.gmra.mrb[0].mxu0 %v510
      %v791 = vpop.f32.mrb[0].mxu0
      %v792 = vadd.f32 %v248, %v791
      %v793 = vpop.f32.mrb[0].mxu0
      %v794 = vpop.f32.mrb[0].mxu0
      %v795 = vadd.f32 %v248, %v794
      %v796 = vpop.f32.mrb[0].mxu0
      %797 = vmatprep.mubr.bf16.mxu0 0
      %798 = vmatmul.mubr.bf16.gmra.mrb[0].mxu0 %v513
      %v799 = vpop.f32.mrb[0].mxu0
      %v800 = vadd.f32 %v248, %v799
      %v801 = vpop.f32.mrb[0].mxu0
      %v802 = vpop.f32.mrb[0].mxu0
      %v803 = vadd.f32 %v248, %v802
      %v804 = vpop.f32.mrb[0].mxu0
      %805 = vmatprep.mubr.bf16.mxu0 0
      %806 = vmatmul.mubr.bf16.gmra.mrb[0].mxu0 %v516
      %v807 = vpop.f32.mrb[0].mxu0
      %v808 = vadd.f32 %v248, %v807
      %v809 = vpop.f32.mrb[0].mxu0
      %v810 = vpop.f32.mrb[0].mxu0
      %v811 = vadd.f32 %v248, %v810
      %v812 = vpop.f32.mrb[0].mxu0
      %813 = vdwg.mxu0
      %v814 = vmax.f32 %v560, 0.0
      %v815 = vmax.f32 %v563, 0.0
      %v816 = vmax.f32 %v568, 0.0
      %v817 = vmax.f32 %v571, 0.0
      %v818 = vmax.f32 %v576, 0.0
      %v819 = vmax.f32 %v579, 0.0
      %v820 = vmax.f32 %v584, 0.0
      %v821 = vmax.f32 %v587, 0.0
      %v822 = vmax.f32 %v592, 0.0
      %v823 = vmax.f32 %v595, 0.0
      %v824 = vmax.f32 %v600, 0.0
      %v825 = vmax.f32 %v603, 0.0
      %v826 = vmax.f32 %v608, 0.0
      %v827 = vmax.f32 %v611, 0.0
      %v828 = vmax.f32 %v616, 0.0
      %v829 = vmax.f32 %v619, 0.0
      %v830 = vmax.f32 %v624, 0.0
      %v831 = vmax.f32 %v627, 0.0
      %v832 = vmax.f32 %v632, 0.0
      %v833 = vmax.f32 %v635, 0.0
      %v834 = vmax.f32 %v640, 0.0
      %v835 = vmax.f32 %v643, 0.0
      %v836 = vmax.f32 %v648, 0.0
      %v837 = vmax.f32 %v651, 0.0
      %v838 = vmax.f32 %v656, 0.0
      %v839 = vmax.f32 %v659, 0.0
      %v840 = vmax.f32 %v664, 0.0
      %v841 = vmax.f32 %v667, 0.0
      %v842 = vmax.f32 %v672, 0.0
      %v843 = vmax.f32 %v675, 0.0
      %v844 = vmax.f32 %v680, 0.0
      %v845 = vmax.f32 %v683, 0.0
      %v846 = vmax.f32 %v688, 0.0
      %v847 = vmax.f32 %v691, 0.0
      %v848 = vmax.f32 %v696, 0.0
      %v849 = vmax.f32 %v699, 0.0
      %v850 = vmax.f32 %v704, 0.0
      %v851 = vmax.f32 %v707, 0.0
      %v852 = vmax.f32 %v712, 0.0
      %v853 = vmax.f32 %v715, 0.0
      %v854 = vmax.f32 %v720, 0.0
      %v855 = vmax.f32 %v723, 0.0
      %v856 = vmax.f32 %v728, 0.0
      %v857 = vmax.f32 %v731, 0.0
      %v858 = vmax.f32 %v736, 0.0
      %v859 = vmax.f32 %v739, 0.0
      %v860 = vmax.f32 %v744, 0.0
      %v861 = vmax.f32 %v747, 0.0
      %v862 = vmax.f32 %v752, 0.0
      %v863 = vmax.f32 %v755, 0.0
      %v864 = vmax.f32 %v760, 0.0
      %v865 = vmax.f32 %v763, 0.0
      %v866 = vmax.f32 %v768, 0.0
      %v867 = vmax.f32 %v771, 0.0
      %v868 = vmax.f32 %v776, 0.0
      %v869 = vmax.f32 %v779, 0.0
      %v870 = vmax.f32 %v784, 0.0
      %v871 = vmax.f32 %v787, 0.0
      %v872 = vmax.f32 %v792, 0.0
      %v873 = vmax.f32 %v795, 0.0
      %v874 = vmax.f32 %v800, 0.0
      %v875 = vmax.f32 %v803, 0.0
      %v876 = vmax.f32 %v808, 0.0
      %v877 = vmax.f32 %v811, 0.0
      %v878 = vpack.c.bf16 %v815, %v814
      %v879 = vpack.c.bf16 %v817, %v816
      %v880 = vpack.c.bf16 %v819, %v818
      %v881 = vpack.c.bf16 %v821, %v820
      %v882 = vpack.c.bf16 %v823, %v822
      %v883 = vpack.c.bf16 %v825, %v824
      %v884 = vpack.c.bf16 %v827, %v826
      %v885 = vpack.c.bf16 %v829, %v828
      %v886 = vpack.c.bf16 %v831, %v830
      %v887 = vpack.c.bf16 %v833, %v832
      %v888 = vpack.c.bf16 %v835, %v834
      %v889 = vpack.c.bf16 %v837, %v836
      %v890 = vpack.c.bf16 %v839, %v838
      %v891 = vpack.c.bf16 %v841, %v840
      %v892 = vpack.c.bf16 %v843, %v842
      %v893 = vpack.c.bf16 %v845, %v844
      %v894 = vpack.c.bf16 %v847, %v846
      %v895 = vpack.c.bf16 %v849, %v848
      %v896 = vpack.c.bf16 %v851, %v850
      %v897 = vpack.c.bf16 %v853, %v852
      %v898 = vpack.c.bf16 %v855, %v854
      %v899 = vpack.c.bf16 %v857, %v856
      %v900 = vpack.c.bf16 %v859, %v858
      %v901 = vpack.c.bf16 %v861, %v860
      %v902 = vpack.c.bf16 %v863, %v862
      %v903 = vpack.c.bf16 %v865, %v864
      %v904 = vpack.c.bf16 %v867, %v866
      %v905 = vpack.c.bf16 %v869, %v868
      %v906 = vpack.c.bf16 %v871, %v870
      %v907 = vpack.c.bf16 %v873, %v872
      %v908 = vpack.c.bf16 %v875, %v874
      %v909 = vpack.c.bf16 %v877, %v876
      %v942 = vunpack.c.l.b16 %v878
      %v943 = vunpack.c.h.b16 %v878
      %v944 = vunpack.c.l.b16 %v879
      %v945 = vunpack.c.h.b16 %v879
      %v946 = vunpack.c.l.b16 %v880
      %v947 = vunpack.c.h.b16 %v880
      %v948 = vunpack.c.l.b16 %v881
      %v949 = vunpack.c.h.b16 %v881
      %v950 = vunpack.c.l.b16 %v882
      %v951 = vunpack.c.h.b16 %v882
      %v952 = vunpack.c.l.b16 %v883
      %v953 = vunpack.c.h.b16 %v883
      %v954 = vunpack.c.l.b16 %v884
      %v955 = vunpack.c.h.b16 %v884
      %v956 = vunpack.c.l.b16 %v885
      %v957 = vunpack.c.h.b16 %v885
      %v958 = vunpack.c.l.b16 %v886
      %v959 = vunpack.c.h.b16 %v886
      %v960 = vunpack.c.l.b16 %v887
      %v961 = vunpack.c.h.b16 %v887
      %v962 = vunpack.c.l.b16 %v888
      %v963 = vunpack.c.h.b16 %v888
      %v964 = vunpack.c.l.b16 %v889
      %v965 = vunpack.c.h.b16 %v889
      %v966 = vunpack.c.l.b16 %v890
      %v967 = vunpack.c.h.b16 %v890
      %v968 = vunpack.c.l.b16 %v891
      %v969 = vunpack.c.h.b16 %v891
      %v970 = vunpack.c.l.b16 %v892
      %v971 = vunpack.c.h.b16 %v892
      %v972 = vunpack.c.l.b16 %v893
      %v973 = vunpack.c.h.b16 %v893
      %v974 = vunpack.c.l.b16 %v894
      %v975 = vunpack.c.h.b16 %v894
      %v976 = vunpack.c.l.b16 %v895
      %v977 = vunpack.c.h.b16 %v895
      %v978 = vunpack.c.l.b16 %v896
      %v979 = vunpack.c.h.b16 %v896
      %v980 = vunpack.c.l.b16 %v897
      %v981 = vunpack.c.h.b16 %v897
      %v982 = vunpack.c.l.b16 %v898
      %v983 = vunpack.c.h.b16 %v898
      %v984 = vunpack.c.l.b16 %v899
      %v985 = vunpack.c.h.b16 %v899
      %v986 = vunpack.c.l.b16 %v900
      %v987 = vunpack.c.h.b16 %v900
      %v988 = vunpack.c.l.b16 %v901
      %v989 = vunpack.c.h.b16 %v901
      %v990 = vunpack.c.l.b16 %v902
      %v991 = vunpack.c.h.b16 %v902
      %v992 = vunpack.c.l.b16 %v903
      %v993 = vunpack.c.h.b16 %v903
      %v994 = vunpack.c.l.b16 %v904
      %v995 = vunpack.c.h.b16 %v904
      %v996 = vunpack.c.l.b16 %v905
      %v997 = vunpack.c.h.b16 %v905
      %v998 = vunpack.c.l.b16 %v906
      %v999 = vunpack.c.h.b16 %v906
      %v1000 = vunpack.c.l.b16 %v907
      %v1001 = vunpack.c.h.b16 %v907
      %v1002 = vunpack.c.l.b16 %v908
      %v1003 = vunpack.c.h.b16 %v908
      %v1004 = vunpack.c.l.b16 %v909
      %v1005 = vunpack.c.h.b16 %v909
      %v1006 = vpack.c.b16 %v942, %v942
      %v1007 = vpack.c.b16 %v943, %v943
      %v1008 = vpack.c.b16 %v944, %v944
      %v1009 = vpack.c.b16 %v945, %v945
      %v1010 = vpack.c.b16 %v946, %v946
      %v1011 = vpack.c.b16 %v947, %v947
      %v1012 = vpack.c.b16 %v948, %v948
      %v1013 = vpack.c.b16 %v949, %v949
      %v1014 = vpack.c.b16 %v950, %v950
      %v1015 = vpack.c.b16 %v951, %v951
      %v1016 = vpack.c.b16 %v952, %v952
      %v1017 = vpack.c.b16 %v953, %v953
      %v1018 = vpack.c.b16 %v954, %v954
      %v1019 = vpack.c.b16 %v955, %v955
      %v1020 = vpack.c.b16 %v956, %v956
      %v1021 = vpack.c.b16 %v957, %v957
      %v1022 = vpack.c.b16 %v958, %v958
      %v1023 = vpack.c.b16 %v959, %v959
      %v1024 = vpack.c.b16 %v960, %v960
      %v1025 = vpack.c.b16 %v961, %v961
      %v1026 = vpack.c.b16 %v962, %v962
      %v1027 = vpack.c.b16 %v963, %v963
      %v1028 = vpack.c.b16 %v964, %v964
      %v1029 = vpack.c.b16 %v965, %v965
      %v1030 = vpack.c.b16 %v966, %v966
      %v1031 = vpack.c.b16 %v967, %v967
      %v1032 = vpack.c.b16 %v968, %v968
      %v1033 = vpack.c.b16 %v969, %v969
      %v1034 = vpack.c.b16 %v970, %v970
      %v1035 = vpack.c.b16 %v971, %v971
      %v1036 = vpack.c.b16 %v972, %v972
      %v1037 = vpack.c.b16 %v973, %v973
      %v1038 = vpack.c.b16 %v974, %v974
      %v1039 = vpack.c.b16 %v975, %v975
      %v1040 = vpack.c.b16 %v976, %v976
      %v1041 = vpack.c.b16 %v977, %v977
      %v1042 = vpack.c.b16 %v978, %v978
      %v1043 = vpack.c.b16 %v979, %v979
      %v1044 = vpack.c.b16 %v980, %v980
      %v1045 = vpack.c.b16 %v981, %v981
      %v1046 = vpack.c.b16 %v982, %v982
      %v1047 = vpack.c.b16 %v983, %v983
      %v1048 = vpack.c.b16 %v984, %v984
      %v1049 = vpack.c.b16 %v985, %v985
      %v1050 = vpack.c.b16 %v986, %v986
      %v1051 = vpack.c.b16 %v987, %v987
      %v1052 = vpack.c.b16 %v988, %v988
      %v1053 = vpack.c.b16 %v989, %v989
      %v1054 = vpack.c.b16 %v990, %v990
      %v1055 = vpack.c.b16 %v991, %v991
      %v1056 = vpack.c.b16 %v992, %v992
      %v1057 = vpack.c.b16 %v993, %v993
      %v1058 = vpack.c.b16 %v994, %v994
      %v1059 = vpack.c.b16 %v995, %v995
      %v1060 = vpack.c.b16 %v996, %v996
      %v1061 = vpack.c.b16 %v997, %v997
      %v1062 = vpack.c.b16 %v998, %v998
      %v1063 = vpack.c.b16 %v999, %v999
      %v1064 = vpack.c.b16 %v1000, %v1000
      %v1065 = vpack.c.b16 %v1001, %v1001
      %v1066 = vpack.c.b16 %v1002, %v1002
      %v1067 = vpack.c.b16 %v1003, %v1003
      %v1068 = vpack.c.b16 %v1004, %v1004
      %v1069 = vpack.c.b16 %v1005, %v1005
      %vm1134 = vcmask 44032
      %1135 = vst.msk [vmem:[%s172] sm:$0xf] %vm1134, %v1006
      %1136 = vst.msk [vmem:[%s172 + $0x4] sm:$0xf] %vm1134, %v1007
      %1137 = vst.msk [vmem:[%s172 + $0x8] sm:$0xf] %vm1134, %v1008
      %1138 = vst.msk [vmem:[%s172 + $0xc] sm:$0xf] %vm1134, %v1009
      %1139 = vst.msk [vmem:[%s172 + $0x10] sm:$0xf] %vm1134, %v1010
      %1140 = vst.msk [vmem:[%s172 + $0x14] sm:$0xf] %vm1134, %v1011
      %1141 = vst.msk [vmem:[%s172 + $0x18] sm:$0xf] %vm1134, %v1012
      %1142 = vst.msk [vmem:[%s172 + $0x1c] sm:$0xf] %vm1134, %v1013
      %1143 = vst.msk [vmem:[%s172 + $0x20] sm:$0xf] %vm1134, %v1014
      %1144 = vst.msk [vmem:[%s172 + $0x24] sm:$0xf] %vm1134, %v1015
      %1145 = vst.msk [vmem:[%s172 + $0x28] sm:$0xf] %vm1134, %v1016
      %1146 = vst.msk [vmem:[%s172 + $0x2c] sm:$0xf] %vm1134, %v1017
      %1147 = vst.msk [vmem:[%s172 + $0x30] sm:$0xf] %vm1134, %v1018
      %1148 = vst.msk [vmem:[%s172 + $0x34] sm:$0xf] %vm1134, %v1019
      %1149 = vst.msk [vmem:[%s172 + $0x38] sm:$0xf] %vm1134, %v1020
      %1150 = vst.msk [vmem:[%s172 + $0x3c] sm:$0xf] %vm1134, %v1021
      %1151 = vst.msk [vmem:[%s172 + $0x40] sm:$0xf] %vm1134, %v1022
      %1152 = vst.msk [vmem:[%s172 + $0x44] sm:$0xf] %vm1134, %v1023
      %1153 = vst.msk [vmem:[%s172 + $0x48] sm:$0xf] %vm1134, %v1024
      %1154 = vst.msk [vmem:[%s172 + $0x4c] sm:$0xf] %vm1134, %v1025
      %1155 = vst.msk [vmem:[%s172 + $0x50] sm:$0xf] %vm1134, %v1026
      %1156 = vst.msk [vmem:[%s172 + $0x54] sm:$0xf] %vm1134, %v1027
      %1157 = vst.msk [vmem:[%s172 + $0x58] sm:$0xf] %vm1134, %v1028
      %1158 = vst.msk [vmem:[%s172 + $0x5c] sm:$0xf] %vm1134, %v1029
      %1159 = vst.msk [vmem:[%s172 + $0x60] sm:$0xf] %vm1134, %v1030
      %1160 = vst.msk [vmem:[%s172 + $0x64] sm:$0xf] %vm1134, %v1031
      %1161 = vst.msk [vmem:[%s172 + $0x68] sm:$0xf] %vm1134, %v1032
      %1162 = vst.msk [vmem:[%s172 + $0x6c] sm:$0xf] %vm1134, %v1033
      %1163 = vst.msk [vmem:[%s172 + $0x70] sm:$0xf] %vm1134, %v1034
      %1164 = vst.msk [vmem:[%s172 + $0x74] sm:$0xf] %vm1134, %v1035
      %1165 = vst.msk [vmem:[%s172 + $0x78] sm:$0xf] %vm1134, %v1036
      %1166 = vst.msk [vmem:[%s172 + $0x7c] sm:$0xf] %vm1134, %v1037
      %1167 = vst.msk [vmem:[%s172 + $0x80] sm:$0xf] %vm1134, %v1038
      %1168 = vst.msk [vmem:[%s172 + $0x84] sm:$0xf] %vm1134, %v1039
      %1169 = vst.msk [vmem:[%s172 + $0x88] sm:$0xf] %vm1134, %v1040
      %1170 = vst.msk [vmem:[%s172 + $0x8c] sm:$0xf] %vm1134, %v1041
      %1171 = vst.msk [vmem:[%s172 + $0x90] sm:$0xf] %vm1134, %v1042
      %1172 = vst.msk [vmem:[%s172 + $0x94] sm:$0xf] %vm1134, %v1043
      %1173 = vst.msk [vmem:[%s172 + $0x98] sm:$0xf] %vm1134, %v1044
      %1174 = vst.msk [vmem:[%s172 + $0x9c] sm:$0xf] %vm1134, %v1045
      %1175 = vst.msk [vmem:[%s172 + $0xa0] sm:$0xf] %vm1134, %v1046
      %1176 = vst.msk [vmem:[%s172 + $0xa4] sm:$0xf] %vm1134, %v1047
      %1177 = vst.msk [vmem:[%s172 + $0xa8] sm:$0xf] %vm1134, %v1048
      %1178 = vst.msk [vmem:[%s172 + $0xac] sm:$0xf] %vm1134, %v1049
      %1179 = vst.msk [vmem:[%s172 + $0xb0] sm:$0xf] %vm1134, %v1050
      %1180 = vst.msk [vmem:[%s172 + $0xb4] sm:$0xf] %vm1134, %v1051
      %1181 = vst.msk [vmem:[%s172 + $0xb8] sm:$0xf] %vm1134, %v1052
      %1182 = vst.msk [vmem:[%s172 + $0xbc] sm:$0xf] %vm1134, %v1053
      %1183 = vst.msk [vmem:[%s172 + $0xc0] sm:$0xf] %vm1134, %v1054
      %1184 = vst.msk [vmem:[%s172 + $0xc4] sm:$0xf] %vm1134, %v1055
      %1185 = vst.msk [vmem:[%s172 + $0xc8] sm:$0xf] %vm1134, %v1056
      %1186 = vst.msk [vmem:[%s172 + $0xcc] sm:$0xf] %vm1134, %v1057
      %1187 = vst.msk [vmem:[%s172 + $0xd0] sm:$0xf] %vm1134, %v1058
      %1188 = vst.msk [vmem:[%s172 + $0xd4] sm:$0xf] %vm1134, %v1059
      %1189 = vst.msk [vmem:[%s172 + $0xd8] sm:$0xf] %vm1134, %v1060
      %1190 = vst.msk [vmem:[%s172 + $0xdc] sm:$0xf] %vm1134, %v1061
      %1191 = vst.msk [vmem:[%s172 + $0xe0] sm:$0xf] %vm1134, %v1062
      %1192 = vst.msk [vmem:[%s172 + $0xe4] sm:$0xf] %vm1134, %v1063
      %1193 = vst.msk [vmem:[%s172 + $0xe8] sm:$0xf] %vm1134, %v1064
      %1194 = vst.msk [vmem:[%s172 + $0xec] sm:$0xf] %vm1134, %v1065
      %1195 = vst.msk [vmem:[%s172 + $0xf0] sm:$0xf] %vm1134, %v1066
      %1196 = vst.msk [vmem:[%s172 + $0xf4] sm:$0xf] %vm1134, %v1067
      %1197 = vst.msk [vmem:[%s172 + $0xf8] sm:$0xf] %vm1134, %v1068
      %1198 = vst.msk [vmem:[%s172 + $0xfc] sm:$0xf] %vm1134, %v1069
      %s1199 = smul.u32 64, %s14
      %p1200 = scmp.lt.s32.totalorder %s1199, 255
      %s1201 = scalar_select %p1200, %s1199, 255
      %s1202 = smul.addr %s1201, 4
      %s1203 = scalar_lea.vmem %s3, %s1202
      // Predicated region
      $region33: #{forward.3} parent=31 // pred_check
        %p1204 = pneg %p100
      $region34: #{forward.3} parent=31 // pred_check_branch
        %1206 = sbr.rel (%p1204) target = $region36
      $region35: #{forward.3} parent=31 // pred_region
        %s1207 = smul.u32 64, %s14
      $region36: #{forward.3} parent=31 // pred_fallthru
        _
    $region32: #{forward.3} parent=5 // pred_fallthru
      _
    %p1208 = scmp.le.s32.totalorder 2, %s9
    // Predicated region
    $region37: #{forward.3} parent=5 // pred_check
      %p1209 = pneg %p1208
    $region38: #{forward.3} parent=5 // pred_check_branch
      %1211 = sbr.rel (%p1209) target = $region40
    $region39: #{forward.3} parent=5 // pred_region
      %s1212 = ssub.s32 %s9, 2
      // Predicated region
      $region41: #{forward.3} parent=39 // pred_check
        %p1213 = pneg %p106
      $region42: #{forward.3} parent=39 // pred_check_branch
        %1215 = sbr.rel (%p1213) target = $region44
      $region43: #{forward.3} parent=39 // pred_region
        %s1216 = smul.u32 64, %s15
        %p1217 = scmp.lt.s32.totalorder %s1216, 255
        %s1218 = scalar_select %p1217, %s1216, 255
        %s1219 = smul.addr %s1218, 4
        %s1220 = scalar_lea.vmem %s3, %s1219
      $region44: #{forward.3} parent=39 // pred_fallthru
        _
    $region40: #{forward.3} parent=5 // pred_fallthru
      _
  $region6: #{forward.3} parent=0 // loop_footer
    %s13 = sadd.s32 1, %s9
  $region7: #{forward.3} parent=0 // loop_footer_branch
    %8 = sbr.rel target = $region3
  $region8: #{forward.3} parent=0 // loop_exit
    _

// kernel: forward.4
$region0: #{forward.4}
  #allocation0 [shape = 'u32[]', space=smem, size = 0x4, offset = 0x4, fixed_abs, tag = 'smem constant byte address 0x4 - core index']
  #allocation1 [shape = 'u32[144,128]{1,0:T(1,128)}', space=vmem, size = 0x12000, scoped, tag = 'internal scratch']
  %s0 = inlined_call_operand.vmem [shape: bf16[208,150], index: 0, kind: input, shape index: {}]
  %s1 = inlined_call_operand.vmem [shape: bf16[150,16], index: 1, kind: input, shape index: {}]
  %s2 = inlined_call_operand.vmem [shape: f32[1,16], index: 2, kind: input, shape index: {}]
  %s3 = inlined_call_operand.vmem [shape: bf16[208,16], index: 3, kind: output, shape index: {}]
  %s4 = sld [smem:[#allocation0]]
  $region22: #{forward.4} parent=0
    _
  %s6 = ssub.s32 1, %s4
  %s7 = scalar_select 0, %s6, %s4
  // Predicated region
  $region2: #{forward.4} parent=0 // pred_check
    _
  $region3: #{forward.4} parent=0 // pred_check_branch
    %9 = sbr.rel (0) target = $region5
  $region4: #{forward.4} parent=0 // pred_region
    _
  $region5: #{forward.4} parent=0 // pred_fallthru
    _
  // Predicated region
  $region6: #{forward.4} parent=0 // pred_check
    _
  $region7: #{forward.4} parent=0 // pred_check_branch
    %11 = sbr.rel (0) target = $region9
  $region8: #{forward.4} parent=0 // pred_region
    _
  $region9: #{forward.4} parent=0 // pred_fallthru
    _
  // Predicated region
  $region10: #{forward.4} parent=0 // pred_check
    _
  $region11: #{forward.4} parent=0 // pred_check_branch
    %13 = sbr.rel (0) target = $region13
  $region12: #{forward.4} parent=0 // pred_region
    _
  $region13: #{forward.4} parent=0 // pred_fallthru
    _
  %v15 = vld [vmem:[%s0] sm:$0xff]
  %v16 = vld [vmem:[%s0 + $0x8] sm:$0xff]
  %v17 = vld [vmem:[%s0 + $0x10] sm:$0xff]
  %v18 = vld [vmem:[%s0 + $0x18] sm:$0xff]
  %v19 = vld [vmem:[%s0 + $0x20] sm:$0xff]
  %v20 = vld [vmem:[%s0 + $0x28] sm:$0xff]
  %v21 = vld [vmem:[%s0 + $0x30] sm:$0xff]
  %v22 = vld [vmem:[%s0 + $0x38] sm:$0xff]
  %v23 = vld [vmem:[%s0 + $0x40] sm:$0xff]
  %v24 = vld [vmem:[%s0 + $0x48] sm:$0xff]
  %v25 = vld [vmem:[%s0 + $0x50] sm:$0xff]
  %v26 = vld [vmem:[%s0 + $0x58] sm:$0xff]
  %v27 = vld [vmem:[%s0 + $0x60] sm:$0xff]
  %v28 = vld [vmem:[%s0 + $0x68] sm:$0xff]
  %v29 = vld [vmem:[%s0 + $0x70] sm:$0xff]
  %v30 = vld [vmem:[%s0 + $0x78] sm:$0xff]
  %v31 = vld [vmem:[%s0 + $0x80] sm:$0xff]
  %v32 = vld [vmem:[%s0 + $0x88] sm:$0xff]
  %v33 = vld [vmem:[%s0 + $0x90] sm:$0xff]
  %v34 = vld [vmem:[%s0 + $0x98] sm:$0xff]
  %v35 = vld [vmem:[%s0 + $0xa0] sm:$0xff]
  %v36 = vld [vmem:[%s0 + $0xa8] sm:$0xff]
  %v37 = vld [vmem:[%s0 + $0xb0] sm:$0xff]
  %v38 = vld [vmem:[%s0 + $0xb8] sm:$0xff]
  %v39 = vld [vmem:[%s0 + $0xc0] sm:$0xff]
  %v40 = vld [vmem:[%s0 + $0xc8] sm:$0xff]
  %v41 = vld [vmem:[%s1] sm:$0xf]
  %v42 = vld [vmem:[%s1 + $0x4] sm:$0xf]
  %v43 = vld [vmem:[%s1 + $0x8] sm:$0xf]
  %v44 = vld [vmem:[%s1 + $0xc] sm:$0xf]
  %v45 = vld [vmem:[%s1 + $0x10] sm:$0xf]
  %v46 = vld [vmem:[%s1 + $0x14] sm:$0xf]
  %v47 = vld [vmem:[%s1 + $0x18] sm:$0xf]
  %v48 = vld [vmem:[%s1 + $0x1c] sm:$0xf]
  %v49 = vld [vmem:[%s1 + $0x20] sm:$0xf]
  %v50 = vld [vmem:[%s1 + $0x24] sm:$0xf]
  %v51 = vld [vmem:[%s1 + $0x28] sm:$0xf]
  %v52 = vld [vmem:[%s1 + $0x2c] sm:$0xf]
  %v53 = vld [vmem:[%s1 + $0x30] sm:$0xf]
  %v54 = vld [vmem:[%s1 + $0x34] sm:$0xf]
  %v55 = vld [vmem:[%s1 + $0x38] sm:$0xf]
  %v56 = vld [vmem:[%s1 + $0x3c] sm:$0xf]
  %v57 = vld [vmem:[%s1 + $0x40] sm:$0xf]
  %v58 = vld [vmem:[%s1 + $0x44] sm:$0xf]
  %v59 = vld [vmem:[%s1 + $0x48] sm:$0x7]
  %v60 = vld [vmem:[%s2] sm:$0x1]
  %v62 = vlaneseq
  %v63 = vshrl.u32 %v62, 7
  %v64 = vsub.s32 0, %v63
  %v65 = vrot.slane %v60, %v64
  %v93 = vunpack.c.l.b16 %v15
  %v94 = vunpack.c.h.b16 %v15
  %v95 = vunpack.c.l.b16 %v16
  %v96 = vunpack.c.h.b16 %v16
  %v97 = vunpack.c.l.b16 %v17
  %v98 = vunpack.c.h.b16 %v17
  %v99 = vunpack.c.l.b16 %v18
  %v100 = vunpack.c.h.b16 %v18
  %v101 = vunpack.c.l.b16 %v19
  %v102 = vunpack.c.h.b16 %v19
  %v103 = vunpack.c.l.b16 %v20
  %v104 = vunpack.c.h.b16 %v20
  %v105 = vunpack.c.l.b16 %v21
  %v106 = vunpack.c.h.b16 %v21
  %v107 = vunpack.c.l.b16 %v22
  %v108 = vunpack.c.h.b16 %v22
  %v109 = vunpack.c.l.b16 %v23
  %v110 = vunpack.c.h.b16 %v23
  %v111 = vunpack.c.l.b16 %v24
  %v112 = vunpack.c.h.b16 %v24
  %v113 = vunpack.c.l.b16 %v25
  %v114 = vunpack.c.h.b16 %v25
  %v115 = vunpack.c.l.b16 %v26
  %v116 = vunpack.c.h.b16 %v26
  %v117 = vunpack.c.l.b16 %v27
  %v118 = vunpack.c.h.b16 %v27
  %v119 = vunpack.c.l.b16 %v28
  %v120 = vunpack.c.h.b16 %v28
  %v121 = vunpack.c.l.b16 %v29
  %v122 = vunpack.c.h.b16 %v29
  %v123 = vunpack.c.l.b16 %v30
  %v124 = vunpack.c.h.b16 %v30
  %v125 = vunpack.c.l.b16 %v31
  %v126 = vunpack.c.h.b16 %v31
  %v127 = vunpack.c.l.b16 %v32
  %v128 = vunpack.c.h.b16 %v32
  %v129 = vunpack.c.l.b16 %v33
  %v130 = vunpack.c.h.b16 %v33
  %v131 = vunpack.c.l.b16 %v34
  %v132 = vunpack.c.h.b16 %v34
  %v133 = vunpack.c.l.b16 %v35
  %v134 = vunpack.c.h.b16 %v35
  %v135 = vunpack.c.l.b16 %v36
  %v136 = vunpack.c.h.b16 %v36
  %v137 = vunpack.c.l.b16 %v37
  %v138 = vunpack.c.h.b16 %v37
  %v139 = vunpack.c.l.b16 %v38
  %v140 = vunpack.c.h.b16 %v38
  %v141 = vunpack.c.l.b16 %v39
  %v142 = vunpack.c.h.b16 %v39
  %v143 = vunpack.c.l.b16 %v40
  %v144 = vunpack.c.h.b16 %v40
  %v145 = vpack.c.b16 %v95, %v93
  %v146 = vpack.c.b16 %v96, %v94
  %v147 = vpack.c.b16 %v99, %v97
  %v148 = vpack.c.b16 %v100, %v98
  %v149 = vpack.c.b16 %v103, %v101
  %v150 = vpack.c.b16 %v104, %v102
  %v151 = vpack.c.b16 %v107, %v105
  %v152 = vpack.c.b16 %v108, %v106
  %v153 = vpack.c.b16 %v111, %v109
  %v154 = vpack.c.b16 %v112, %v110
  %v155 = vpack.c.b16 %v115, %v113
  %v156 = vpack.c.b16 %v116, %v114
  %v157 = vpack.c.b16 %v119, %v117
  %v158 = vpack.c.b16 %v120, %v118
  %v159 = vpack.c.b16 %v123, %v121
  %v160 = vpack.c.b16 %v124, %v122
  %v161 = vpack.c.b16 %v127, %v125
  %v162 = vpack.c.b16 %v128, %v126
  %v163 = vpack.c.b16 %v131, %v129
  %v164 = vpack.c.b16 %v132, %v130
  %v165 = vpack.c.b16 %v135, %v133
  %v166 = vpack.c.b16 %v136, %v134
  %v167 = vpack.c.b16 %v139, %v137
  %v168 = vpack.c.b16 %v140, %v138
  %v169 = vpack.c.b16 %v143, %v141
  %v170 = vpack.c.b16 %v144, %v142
  %v203 = vunpack.c.l.b16 %v41
  %v204 = vunpack.c.l.b16 %v42
  %v205 = vunpack.c.l.b16 %v43
  %v206 = vunpack.c.l.b16 %v44
  %v207 = vunpack.c.l.b16 %v45
  %v208 = vunpack.c.l.b16 %v46
  %v209 = vunpack.c.l.b16 %v47
  %v210 = vunpack.c.l.b16 %v48
  %v211 = vunpack.c.l.b16 %v49
  %v212 = vunpack.c.l.b16 %v50
  %v213 = vunpack.c.l.b16 %v51
  %v214 = vunpack.c.l.b16 %v52
  %v215 = vunpack.c.l.b16 %v53
  %v216 = vunpack.c.l.b16 %v54
  %v217 = vunpack.c.l.b16 %v55
  %v218 = vunpack.c.l.b16 %v56
  %v219 = vunpack.c.l.b16 %v57
  %v220 = vunpack.c.l.b16 %v58
  %v221 = vunpack.c.l.b16 %v59
  %v222 = vpack.c.b16 %v204, %v203
  %v223 = vpack.c.b16 %v206, %v205
  %v224 = vpack.c.b16 %v208, %v207
  %v225 = vpack.c.b16 %v210, %v209
  %v226 = vpack.c.b16 %v212, %v211
  %v227 = vpack.c.b16 %v214, %v213
  %v228 = vpack.c.b16 %v216, %v215
  %v229 = vpack.c.b16 %v218, %v217
  %v230 = vpack.c.b16 %v220, %v219
  %v231 = vpack.c.b16 %v221, %v221
  %vm241 = vcmask 179200
  %v243 = vsel %vm241, %v146, 0
  %v246 = vsel %vm241, %v148, 0
  %v249 = vsel %vm241, %v150, 0
  %v252 = vsel %vm241, %v152, 0
  %v255 = vsel %vm241, %v154, 0
  %v258 = vsel %vm241, %v156, 0
  %v261 = vsel %vm241, %v158, 0
  %v264 = vsel %vm241, %v160, 0
  %v267 = vsel %vm241, %v162, 0
  %v270 = vsel %vm241, %v164, 0
  %v273 = vsel %vm241, %v166, 0
  %v276 = vsel %vm241, %v168, 0
  %v279 = vsel %vm241, %v170, 0
  %vm281 = vcmask 1042432
  %v283 = vsel %vm281, %v231, 0
  %285 = vmatprep.subr.bf16.mxu0 0
  %286 = vmatpush1.bf16.msra.mxu0 %v222
  %287 = vmatprep.subr.bf16.mxu0 0
  %288 = vmatpush1.bf16.msra.mxu0 %v223
  %289 = vmatprep.subr.bf16.mxu0 0
  %290 = vmatpush1.bf16.msra.mxu0 %v224
  %291 = vmatprep.subr.bf16.mxu0 0
  %292 = vmatpush1.bf16.msra.mxu0 %v225
  %293 = vmatprep.subr.bf16.mxu0 0
  %294 = vmatpush1.bf16.msra.mxu0 %v226
  %295 = vmatprep.subr.bf16.mxu0 0
  %296 = vmatpush1.bf16.msra.mxu0 %v227
  %297 = vmatprep.subr.bf16.mxu0 0
  %298 = vmatpush1.bf16.msra.mxu0 %v228
  %299 = vmatprep.subr.bf16.mxu0 0
  %300 = vmatpush1.bf16.msra.mxu0 %v229
  %301 = vmatprep.subr.bf16.mxu0 0
  %302 = vmatpush1.bf16.msra.mxu0 %v230
  %303 = vmatprep.subr.bf16.mxu0 0
  %304 = vmatpush1.bf16.msra.mxu0 %v283
  %305 = vmatprep.subr.bf16.mxu0 0
  %306 = vmatpush1.bf16.msra.mxu0 0
  %307 = vmatprep.subr.bf16.mxu0 0
  %308 = vmatpush1.bf16.msra.mxu0 0
  %309 = vmatprep.subr.bf16.mxu0 0
  %310 = vmatpush1.bf16.msra.mxu0 0
  %311 = vmatprep.subr.bf16.mxu0 0
  %312 = vmatpush1.bf16.msra.mxu0 0
  %313 = vmatprep.subr.bf16.mxu0 0
  %314 = vmatpush1.bf16.msra.mxu0 0
  %315 = vmatprep.subr.bf16.mxu0 0
  %316 = vmatpush1.bf16.msra.mxu0 0
  %317 = vmatprep.mubr.bf16.mxu0 %v243
  %318 = vmatmul.mubr.bf16.gmra.mrb[0].mxu0 %v145
  %v319 = vpop.f32.mrb[0].mxu0
  %v320 = vadd.f32 %v65, %v319
  %v321 = vpop.f32.mrb[0].mxu0
  %v322 = vpop.f32.mrb[0].mxu0
  %v323 = vadd.f32 %v65, %v322
  %v324 = vpop.f32.mrb[0].mxu0
  %325 = vmatprep.mubr.bf16.mxu0 %v246
  %326 = vmatmul.mubr.bf16.gmra.mrb[0].mxu0 %v147
  %v327 = vpop.f32.mrb[0].mxu0
  %v328 = vadd.f32 %v65, %v327
  %v329 = vpop.f32.mrb[0].mxu0
  %v330 = vpop.f32.mrb[0].mxu0
  %v331 = vadd.f32 %v65, %v330
  %v332 = vpop.f32.mrb[0].mxu0
  %333 = vmatprep.mubr.bf16.mxu0 %v249
  %334 = vmatmul.mubr.bf16.gmra.mrb[0].mxu0 %v149
  %v335 = vpop.f32.mrb[0].mxu0
  %v336 = vadd.f32 %v65, %v335
  %v337 = vpop.f32.mrb[0].mxu0
  %v338 = vpop.f32.mrb[0].mxu0
  %v339 = vadd.f32 %v65, %v338
  %v340 = vpop.f32.mrb[0].mxu0
  %341 = vmatprep.mubr.bf16.mxu0 %v252
  %342 = vmatmul.mubr.bf16.gmra.mrb[0].mxu0 %v151
  %v343 = vpop.f32.mrb[0].mxu0
  %v344 = vadd.f32 %v65, %v343
  %v345 = vpop.f32.mrb[0].mxu0
  %v346 = vpop.f32.mrb[0].mxu0
  %v347 = vadd.f32 %v65, %v346
  %v348 = vpop.f32.mrb[0].mxu0
  %349 = vmatprep.mubr.bf16.mxu0 %v255
  %350 = vmatmul.mubr.bf16.gmra.mrb[0].mxu0 %v153
  %v351 = vpop.f32.mrb[0].mxu0
  %v352 = vadd.f32 %v65, %v351
  %v353 = vpop.f32.mrb[0].mxu0
  %v354 = vpop.f32.mrb[0].mxu0
  %v355 = vadd.f32 %v65, %v354
  %v356 = vpop.f32.mrb[0].mxu0
  %357 = vmatprep.mubr.bf16.mxu0 %v258
  %358 = vmatmul.mubr.bf16.gmra.mrb[0].mxu0 %v155
  %v359 = vpop.f32.mrb[0].mxu0
  %v360 = vadd.f32 %v65, %v359
  %v361 = vpop.f32.mrb[0].mxu0
  %v362 = vpop.f32.mrb[0].mxu0
  %v363 = vadd.f32 %v65, %v362
  %v364 = vpop.f32.mrb[0].mxu0
  %365 = vmatprep.mubr.bf16.mxu0 %v261
  %366 = vmatmul.mubr.bf16.gmra.mrb[0].mxu0 %v157
  %v367 = vpop.f32.mrb[0].mxu0
  %v368 = vadd.f32 %v65, %v367
  %v369 = vpop.f32.mrb[0].mxu0
  %v370 = vpop.f32.mrb[0].mxu0
  %v371 = vadd.f32 %v65, %v370
  %v372 = vpop.f32.mrb[0].mxu0
  %373 = vmatprep.mubr.bf16.mxu0 %v264
  %374 = vmatmul.mubr.bf16.gmra.mrb[0].mxu0 %v159
  %v375 = vpop.f32.mrb[0].mxu0
  %v376 = vadd.f32 %v65, %v375
  %v377 = vpop.f32.mrb[0].mxu0
  %v378 = vpop.f32.mrb[0].mxu0
  %v379 = vadd.f32 %v65, %v378
  %v380 = vpop.f32.mrb[0].mxu0
  %381 = vmatprep.mubr.bf16.mxu0 %v267
  %382 = vmatmul.mubr.bf16.gmra.mrb[0].mxu0 %v161
  %v383 = vpop.f32.mrb[0].mxu0
  %v384 = vadd.f32 %v65, %v383
  %v385 = vpop.f32.mrb[0].mxu0
  %v386 = vpop.f32.mrb[0].mxu0
  %v387 = vadd.f32 %v65, %v386
  %v388 = vpop.f32.mrb[0].mxu0
  %389 = vmatprep.mubr.bf16.mxu0 %v270
  %390 = vmatmul.mubr.bf16.gmra.mrb[0].mxu0 %v163
  %v391 = vpop.f32.mrb[0].mxu0
  %v392 = vadd.f32 %v65, %v391
  %v393 = vpop.f32.mrb[0].mxu0
  %v394 = vpop.f32.mrb[0].mxu0
  %v395 = vadd.f32 %v65, %v394
  %v396 = vpop.f32.mrb[0].mxu0
  %397 = vmatprep.mubr.bf16.mxu0 %v273
  %398 = vmatmul.mubr.bf16.gmra.mrb[0].mxu0 %v165
  %v399 = vpop.f32.mrb[0].mxu0
  %v400 = vadd.f32 %v65, %v399
  %v401 = vpop.f32.mrb[0].mxu0
  %v402 = vpop.f32.mrb[0].mxu0
  %v403 = vadd.f32 %v65, %v402
  %v404 = vpop.f32.mrb[0].mxu0
  %405 = vmatprep.mubr.bf16.mxu0 %v276
  %406 = vmatmul.mubr.bf16.gmra.mrb[0].mxu0 %v167
  %v407 = vpop.f32.mrb[0].mxu0
  %v408 = vadd.f32 %v65, %v407
  %v409 = vpop.f32.mrb[0].mxu0
  %v410 = vpop.f32.mrb[0].mxu0
  %v411 = vadd.f32 %v65, %v410
  %v412 = vpop.f32.mrb[0].mxu0
  %413 = vmatprep.mubr.bf16.mxu0 %v279
  %414 = vmatmul.mubr.bf16.gmra.mrb[0].mxu0 %v169
  %v415 = vpop.f32.mrb[0].mxu0
  %v416 = vadd.f32 %v65, %v415
  %v417 = vpop.f32.mrb[0].mxu0
  %v418 = vpop.f32.mrb[0].mxu0
  %v419 = vadd.f32 %v65, %v418
  %v420 = vpop.f32.mrb[0].mxu0
  %421 = vdwg.mxu0
  %v422 = vmax.f32 %v320, 0.0
  %v423 = vmax.f32 %v323, 0.0
  %v424 = vmax.f32 %v328, 0.0
  %v425 = vmax.f32 %v331, 0.0
  %v426 = vmax.f32 %v336, 0.0
  %v427 = vmax.f32 %v339, 0.0
  %v428 = vmax.f32 %v344, 0.0
  %v429 = vmax.f32 %v347, 0.0
  %v430 = vmax.f32 %v352, 0.0
  %v431 = vmax.f32 %v355, 0.0
  %v432 = vmax.f32 %v360, 0.0
  %v433 = vmax.f32 %v363, 0.0
  %v434 = vmax.f32 %v368, 0.0
  %v435 = vmax.f32 %v371, 0.0
  %v436 = vmax.f32 %v376, 0.0
  %v437 = vmax.f32 %v379, 0.0
  %v438 = vmax.f32 %v384, 0.0
  %v439 = vmax.f32 %v387, 0.0
  %v440 = vmax.f32 %v392, 0.0
  %v441 = vmax.f32 %v395, 0.0
  %v442 = vmax.f32 %v400, 0.0
  %v443 = vmax.f32 %v403, 0.0
  %v444 = vmax.f32 %v408, 0.0
  %v445 = vmax.f32 %v411, 0.0
  %v446 = vmax.f32 %v416, 0.0
  %v447 = vmax.f32 %v419, 0.0
  %v448 = vpack.c.bf16 %v423, %v422
  %v449 = vpack.c.bf16 %v425, %v424
  %v450 = vpack.c.bf16 %v427, %v426
  %v451 = vpack.c.bf16 %v429, %v428
  %v452 = vpack.c.bf16 %v431, %v430
  %v453 = vpack.c.bf16 %v433, %v432
  %v454 = vpack.c.bf16 %v435, %v434
  %v455 = vpack.c.bf16 %v437, %v436
  %v456 = vpack.c.bf16 %v439, %v438
  %v457 = vpack.c.bf16 %v441, %v440
  %v458 = vpack.c.bf16 %v443, %v442
  %v459 = vpack.c.bf16 %v445, %v444
  %v460 = vpack.c.bf16 %v447, %v446
  %v474 = vunpack.c.l.b16 %v448
  %v475 = vunpack.c.h.b16 %v448
  %v476 = vunpack.c.l.b16 %v449
  %v477 = vunpack.c.h.b16 %v449
  %v478 = vunpack.c.l.b16 %v450
  %v479 = vunpack.c.h.b16 %v450
  %v480 = vunpack.c.l.b16 %v451
  %v481 = vunpack.c.h.b16 %v451
  %v482 = vunpack.c.l.b16 %v452
  %v483 = vunpack.c.h.b16 %v452
  %v484 = vunpack.c.l.b16 %v453
  %v485 = vunpack.c.h.b16 %v453
  %v486 = vunpack.c.l.b16 %v454
  %v487 = vunpack.c.h.b16 %v454
  %v488 = vunpack.c.l.b16 %v455
  %v489 = vunpack.c.h.b16 %v455
  %v490 = vunpack.c.l.b16 %v456
  %v491 = vunpack.c.h.b16 %v456
  %v492 = vunpack.c.l.b16 %v457
  %v493 = vunpack.c.h.b16 %v457
  %v494 = vunpack.c.l.b16 %v458
  %v495 = vunpack.c.h.b16 %v458
  %v496 = vunpack.c.l.b16 %v459
  %v497 = vunpack.c.h.b16 %v459
  %v498 = vunpack.c.l.b16 %v460
  %v499 = vunpack.c.h.b16 %v460
  %v500 = vpack.c.b16 %v474, %v474
  %v501 = vpack.c.b16 %v475, %v475
  %v502 = vpack.c.b16 %v476, %v476
  %v503 = vpack.c.b16 %v477, %v477
  %v504 = vpack.c.b16 %v478, %v478
  %v505 = vpack.c.b16 %v479, %v479
  %v506 = vpack.c.b16 %v480, %v480
  %v507 = vpack.c.b16 %v481, %v481
  %v508 = vpack.c.b16 %v482, %v482
  %v509 = vpack.c.b16 %v483, %v483
  %v510 = vpack.c.b16 %v484, %v484
  %v511 = vpack.c.b16 %v485, %v485
  %v512 = vpack.c.b16 %v486, %v486
  %v513 = vpack.c.b16 %v487, %v487
  %v514 = vpack.c.b16 %v488, %v488
  %v515 = vpack.c.b16 %v489, %v489
  %v516 = vpack.c.b16 %v490, %v490
  %v517 = vpack.c.b16 %v491, %v491
  %v518 = vpack.c.b16 %v492, %v492
  %v519 = vpack.c.b16 %v493, %v493
  %v520 = vpack.c.b16 %v494, %v494
  %v521 = vpack.c.b16 %v495, %v495
  %v522 = vpack.c.b16 %v496, %v496
  %v523 = vpack.c.b16 %v497, %v497
  %v524 = vpack.c.b16 %v498, %v498
  %v525 = vpack.c.b16 %v499, %v499
  %vm552 = vcmask 125952
  %553 = vst.msk [vmem:[%s3] sm:$0xf] %vm552, %v500
  %554 = vst.msk [vmem:[%s3 + $0x4] sm:$0xf] %vm552, %v501
  %555 = vst.msk [vmem:[%s3 + $0x8] sm:$0xf] %vm552, %v502
  %556 = vst.msk [vmem:[%s3 + $0xc] sm:$0xf] %vm552, %v503
  %557 = vst.msk [vmem:[%s3 + $0x10] sm:$0xf] %vm552, %v504
  %558 = vst.msk [vmem:[%s3 + $0x14] sm:$0xf] %vm552, %v505
  %559 = vst.msk [vmem:[%s3 + $0x18] sm:$0xf] %vm552, %v506
  %560 = vst.msk [vmem:[%s3 + $0x1c] sm:$0xf] %vm552, %v507
  %561 = vst.msk [vmem:[%s3 + $0x20] sm:$0xf] %vm552, %v508
  %562 = vst.msk [vmem:[%s3 + $0x24] sm:$0xf] %vm552, %v509
  %563 = vst.msk [vmem:[%s3 + $0x28] sm:$0xf] %vm552, %v510
  %564 = vst.msk [vmem:[%s3 + $0x2c] sm:$0xf] %vm552, %v511
  %565 = vst.msk [vmem:[%s3 + $0x30] sm:$0xf] %vm552, %v512
  %566 = vst.msk [vmem:[%s3 + $0x34] sm:$0xf] %vm552, %v513
  %567 = vst.msk [vmem:[%s3 + $0x38] sm:$0xf] %vm552, %v514
  %568 = vst.msk [vmem:[%s3 + $0x3c] sm:$0xf] %vm552, %v515
  %569 = vst.msk [vmem:[%s3 + $0x40] sm:$0xf] %vm552, %v516
  %570 = vst.msk [vmem:[%s3 + $0x44] sm:$0xf] %vm552, %v517
  %571 = vst.msk [vmem:[%s3 + $0x48] sm:$0xf] %vm552, %v518
  %572 = vst.msk [vmem:[%s3 + $0x4c] sm:$0xf] %vm552, %v519
  %573 = vst.msk [vmem:[%s3 + $0x50] sm:$0xf] %vm552, %v520
  %574 = vst.msk [vmem:[%s3 + $0x54] sm:$0xf] %vm552, %v521
  %575 = vst.msk [vmem:[%s3 + $0x58] sm:$0xf] %vm552, %v522
  %576 = vst.msk [vmem:[%s3 + $0x5c] sm:$0xf] %vm552, %v523
  %577 = vst.msk [vmem:[%s3 + $0x60] sm:$0xf] %vm552, %v524
  %578 = vst.msk [vmem:[%s3 + $0x64] sm:$0xf] %vm552, %v525
  // Predicated region
  $region14: #{forward.4} parent=0 // pred_check
    _
  $region15: #{forward.4} parent=0 // pred_check_branch
    %580 = sbr.rel (0) target = $region17
  $region16: #{forward.4} parent=0 // pred_region
    _
  $region17: #{forward.4} parent=0 // pred_fallthru
    _
  // Predicated region
  $region18: #{forward.4} parent=0 // pred_check
    _
  $region19: #{forward.4} parent=0 // pred_check_branch
    %582 = sbr.rel (0) target = $region21
  $region20: #{forward.4} parent=0 // pred_region
    _
  $region21: #{forward.4} parent=0 // pred_fallthru
    _

// kernel: forward.5
$region0: #{forward.5}
  #allocation0 [shape = 'u32[]', space=smem, size = 0x4, offset = 0x4, fixed_abs, tag = 'smem constant byte address 0x4 - core index']
  #allocation1 [shape = 'u32[144,128]{1,0:T(1,128)}', space=vmem, size = 0x12000, scoped, tag = 'internal scratch']
  %s0 = inlined_call_operand.vmem [shape: bf16[16,400], index: 0, kind: input, shape index: {}]
  %s1 = inlined_call_operand.vmem [shape: bf16[400,120], index: 1, kind: input, shape index: {}]
  %s2 = inlined_call_operand.vmem [shape: f32[1,120], index: 2, kind: input, shape index: {}]
  %s3 = inlined_call_operand.vmem [shape: bf16[120,84], index: 3, kind: input, shape index: {}]
  %s4 = inlined_call_operand.vmem [shape: f32[1,84], index: 4, kind: input, shape index: {}]
  %s5 = inlined_call_operand.vmem [shape: bf16[84,2], index: 5, kind: input, shape index: {}]
  %s6 = inlined_call_operand.vmem [shape: f32[1,2], index: 6, kind: input, shape index: {}]
  %s7 = inlined_call_operand.vmem [shape: f32[16,2], index: 7, kind: output, shape index: {}]
  %s8 = sld [smem:[#allocation0]]
  $region38: #{forward.5} parent=0
    _
  %s10 = ssub.s32 1, %s8
  %s11 = scalar_select 0, %s10, %s8
  // Predicated region
  $region2: #{forward.5} parent=0 // pred_check
    _
  $region3: #{forward.5} parent=0 // pred_check_branch
    %13 = sbr.rel (0) target = $region5
  $region4: #{forward.5} parent=0 // pred_region
    _
  $region5: #{forward.5} parent=0 // pred_fallthru
    _
  // Predicated region
  $region6: #{forward.5} parent=0 // pred_check
    _
  $region7: #{forward.5} parent=0 // pred_check_branch
    %15 = sbr.rel (0) target = $region9
  $region8: #{forward.5} parent=0 // pred_region
    _
  $region9: #{forward.5} parent=0 // pred_fallthru
    _
  // Predicated region
  $region10: #{forward.5} parent=0 // pred_check
    _
  $region11: #{forward.5} parent=0 // pred_check_branch
    %17 = sbr.rel (0) target = $region13
  $region12: #{forward.5} parent=0 // pred_region
    _
  $region13: #{forward.5} parent=0 // pred_fallthru
    _
  // Predicated region
  $region14: #{forward.5} parent=0 // pred_check
    _
  $region15: #{forward.5} parent=0 // pred_check_branch
    %19 = sbr.rel (0) target = $region17
  $region16: #{forward.5} parent=0 // pred_region
    _
  $region17: #{forward.5} parent=0 // pred_fallthru
    _
  // Predicated region
  $region18: #{forward.5} parent=0 // pred_check
    _
  $region19: #{forward.5} parent=0 // pred_check_branch
    %21 = sbr.rel (0) target = $region21
  $region20: #{forward.5} parent=0 // pred_region
    _
  $region21: #{forward.5} parent=0 // pred_fallthru
    _
  // Predicated region
  $region22: #{forward.5} parent=0 // pred_check
    _
  $region23: #{forward.5} parent=0 // pred_check_branch
    %23 = sbr.rel (0) target = $region25
  $region24: #{forward.5} parent=0 // pred_region
    _
  $region25: #{forward.5} parent=0 // pred_fallthru
    _
  // Predicated region
  $region26: #{forward.5} parent=0 // pred_check
    _
  $region27: #{forward.5} parent=0 // pred_check_branch
    %25 = sbr.rel (0) target = $region29
  $region28: #{forward.5} parent=0 // pred_region
    _
  $region29: #{forward.5} parent=0 // pred_fallthru
    _
  %v27 = vld [vmem:[%s0] sm:$0xff]
  %v28 = vld [vmem:[%s0 + $0x8] sm:$0xff]
  %v29 = vld [vmem:[%s0 + $0x10] sm:$0xff]
  %v30 = vld [vmem:[%s0 + $0x18] sm:$0xff]
  %v31 = vld [vmem:[%s1] sm:$0xf]
  %v32 = vld [vmem:[%s1 + $0x4] sm:$0xf]
  %v33 = vld [vmem:[%s1 + $0x8] sm:$0xf]
  %v34 = vld [vmem:[%s1 + $0xc] sm:$0xf]
  %v35 = vld [vmem:[%s1 + $0x10] sm:$0xf]
  %v36 = vld [vmem:[%s1 + $0x14] sm:$0xf]
  %v37 = vld [vmem:[%s1 + $0x18] sm:$0xf]
  %v38 = vld [vmem:[%s1 + $0x1c] sm:$0xf]
  %v39 = vld [vmem:[%s1 + $0x20] sm:$0xf]
  %v40 = vld [vmem:[%s1 + $0x24] sm:$0xf]
  %v41 = vld [vmem:[%s1 + $0x28] sm:$0xf]
  %v42 = vld [vmem:[%s1 + $0x2c] sm:$0xf]
  %v43 = vld [vmem:[%s1 + $0x30] sm:$0xf]
  %v44 = vld [vmem:[%s1 + $0x34] sm:$0xf]
  %v45 = vld [vmem:[%s1 + $0x38] sm:$0xf]
  %v46 = vld [vmem:[%s1 + $0x3c] sm:$0xf]
  %v47 = vld [vmem:[%s1 + $0x40] sm:$0xf]
  %v48 = vld [vmem:[%s1 + $0x44] sm:$0xf]
  %v49 = vld [vmem:[%s1 + $0x48] sm:$0xf]
  %v50 = vld [vmem:[%s1 + $0x4c] sm:$0xf]
  %v51 = vld [vmem:[%s1 + $0x50] sm:$0xf]
  %v52 = vld [vmem:[%s1 + $0x54] sm:$0xf]
  %v53 = vld [vmem:[%s1 + $0x58] sm:$0xf]
  %v54 = vld [vmem:[%s1 + $0x5c] sm:$0xf]
  %v55 = vld [vmem:[%s1 + $0x60] sm:$0xf]
  %v56 = vld [vmem:[%s1 + $0x64] sm:$0xf]
  %v57 = vld [vmem:[%s1 + $0x68] sm:$0xf]
  %v58 = vld [vmem:[%s1 + $0x6c] sm:$0xf]
  %v59 = vld [vmem:[%s1 + $0x70] sm:$0xf]
  %v60 = vld [vmem:[%s1 + $0x74] sm:$0xf]
  %v61 = vld [vmem:[%s1 + $0x78] sm:$0xf]
  %v62 = vld [vmem:[%s1 + $0x7c] sm:$0xf]
  %v63 = vld [vmem:[%s1 + $0x80] sm:$0xf]
  %v64 = vld [vmem:[%s1 + $0x84] sm:$0xf]
  %v65 = vld [vmem:[%s1 + $0x88] sm:$0xf]
  %v66 = vld [vmem:[%s1 + $0x8c] sm:$0xf]
  %v67 = vld [vmem:[%s1 + $0x90] sm:$0xf]
  %v68 = vld [vmem:[%s1 + $0x94] sm:$0xf]
  %v69 = vld [vmem:[%s1 + $0x98] sm:$0xf]
  %v70 = vld [vmem:[%s1 + $0x9c] sm:$0xf]
  %v71 = vld [vmem:[%s1 + $0xa0] sm:$0xf]
  %v72 = vld [vmem:[%s1 + $0xa4] sm:$0xf]
  %v73 = vld [vmem:[%s1 + $0xa8] sm:$0xf]
  %v74 = vld [vmem:[%s1 + $0xac] sm:$0xf]
  %v75 = vld [vmem:[%s1 + $0xb0] sm:$0xf]
  %v76 = vld [vmem:[%s1 + $0xb4] sm:$0xf]
  %v77 = vld [vmem:[%s1 + $0xb8] sm:$0xf]
  %v78 = vld [vmem:[%s1 + $0xbc] sm:$0xf]
  %v79 = vld [vmem:[%s1 + $0xc0] sm:$0xf]
  %v80 = vld [vmem:[%s1 + $0xc4] sm:$0xf]
  %v81 = vld [vmem:[%s2] sm:$0x1]
  %v83 = vlaneseq
  %v84 = vshrl.u32 %v83, 7
  %v85 = vsub.s32 0, %v84
  %v86 = vrot.slane %v81, %v85
  %v92 = vunpack.c.l.b16 %v27
  %v93 = vunpack.c.h.b16 %v27
  %v94 = vunpack.c.l.b16 %v28
  %v95 = vunpack.c.h.b16 %v28
  %v96 = vunpack.c.l.b16 %v29
  %v97 = vunpack.c.h.b16 %v29
  %v98 = vunpack.c.l.b16 %v30
  %v99 = vunpack.c.h.b16 %v30
  %v100 = vpack.c.b16 %v96, %v92
  %v101 = vpack.c.b16 %v97, %v93
  %v102 = vpack.c.b16 %v98, %v94
  %v103 = vpack.c.b16 %v99, %v95
  %v157 = vunpack.c.l.b16 %v31
  %v158 = vunpack.c.l.b16 %v32
  %v159 = vunpack.c.l.b16 %v33
  %v160 = vunpack.c.l.b16 %v34
  %v161 = vunpack.c.l.b16 %v35
  %v162 = vunpack.c.l.b16 %v36
  %v163 = vunpack.c.l.b16 %v37
  %v164 = vunpack.c.l.b16 %v38
  %v165 = vunpack.c.l.b16 %v39
  %v166 = vunpack.c.l.b16 %v40
  %v167 = vunpack.c.l.b16 %v41
  %v168 = vunpack.c.l.b16 %v42
  %v169 = vunpack.c.l.b16 %v43
  %v170 = vunpack.c.l.b16 %v44
  %v171 = vunpack.c.l.b16 %v45
  %v172 = vunpack.c.l.b16 %v46
  %v173 = vunpack.c.l.b16 %v47
  %v174 = vunpack.c.l.b16 %v48
  %v175 = vunpack.c.l.b16 %v49
  %v176 = vunpack.c.l.b16 %v50
  %v177 = vunpack.c.l.b16 %v51
  %v178 = vunpack.c.l.b16 %v52
  %v179 = vunpack.c.l.b16 %v53
  %v180 = vunpack.c.l.b16 %v54
  %v181 = vunpack.c.l.b16 %v55
  %v182 = vunpack.c.l.b16 %v56
  %v183 = vunpack.c.l.b16 %v57
  %v184 = vunpack.c.l.b16 %v58
  %v185 = vunpack.c.l.b16 %v59
  %v186 = vunpack.c.l.b16 %v60
  %v187 = vunpack.c.l.b16 %v61
  %v188 = vunpack.c.l.b16 %v62
  %v189 = vunpack.c.l.b16 %v63
  %v190 = vunpack.c.l.b16 %v64
  %v191 = vunpack.c.l.b16 %v65
  %v192 = vunpack.c.l.b16 %v66
  %v193 = vunpack.c.l.b16 %v67
  %v194 = vunpack.c.l.b16 %v68
  %v195 = vunpack.c.l.b16 %v69
  %v196 = vunpack.c.l.b16 %v70
  %v197 = vunpack.c.l.b16 %v71
  %v198 = vunpack.c.l.b16 %v72
  %v199 = vunpack.c.l.b16 %v73
  %v200 = vunpack.c.l.b16 %v74
  %v201 = vunpack.c.l.b16 %v75
  %v202 = vunpack.c.l.b16 %v76
  %v203 = vunpack.c.l.b16 %v77
  %v204 = vunpack.c.l.b16 %v78
  %v205 = vunpack.c.l.b16 %v79
  %v206 = vunpack.c.l.b16 %v80
  %v207 = vpack.c.b16 %v158, %v157
  %v208 = vpack.c.b16 %v160, %v159
  %v209 = vpack.c.b16 %v162, %v161
  %v210 = vpack.c.b16 %v164, %v163
  %v211 = vpack.c.b16 %v166, %v165
  %v212 = vpack.c.b16 %v168, %v167
  %v213 = vpack.c.b16 %v170, %v169
  %v214 = vpack.c.b16 %v172, %v171
  %v215 = vpack.c.b16 %v174, %v173
  %v216 = vpack.c.b16 %v176, %v175
  %v217 = vpack.c.b16 %v178, %v177
  %v218 = vpack.c.b16 %v180, %v179
  %v219 = vpack.c.b16 %v182, %v181
  %v220 = vpack.c.b16 %v184, %v183
  %v221 = vpack.c.b16 %v186, %v185
  %v222 = vpack.c.b16 %v188, %v187
  %v223 = vpack.c.b16 %v190, %v189
  %v224 = vpack.c.b16 %v192, %v191
  %v225 = vpack.c.b16 %v194, %v193
  %v226 = vpack.c.b16 %v196, %v195
  %v227 = vpack.c.b16 %v198, %v197
  %v228 = vpack.c.b16 %v200, %v199
  %v229 = vpack.c.b16 %v202, %v201
  %v230 = vpack.c.b16 %v204, %v203
  %v231 = vpack.c.b16 %v206, %v205
  %vm257 = vcmask 130048
  %v259 = vsel %vm257, %v103, 0
  %261 = vmatprep.subr.bf16.mxu0 0
  %262 = vmatpush1.bf16.msra.mxu0 %v207
  %263 = vmatprep.subr.bf16.mxu0 0
  %264 = vmatpush1.bf16.msra.mxu0 %v208
  %265 = vmatprep.subr.bf16.mxu0 0
  %266 = vmatpush1.bf16.msra.mxu0 %v209
  %267 = vmatprep.subr.bf16.mxu0 0
  %268 = vmatpush1.bf16.msra.mxu0 %v210
  %269 = vmatprep.subr.bf16.mxu0 0
  %270 = vmatpush1.bf16.msra.mxu0 %v211
  %271 = vmatprep.subr.bf16.mxu0 0
  %272 = vmatpush1.bf16.msra.mxu0 %v212
  %273 = vmatprep.subr.bf16.mxu0 0
  %274 = vmatpush1.bf16.msra.mxu0 %v213
  %275 = vmatprep.subr.bf16.mxu0 0
  %276 = vmatpush1.bf16.msra.mxu0 %v214
  %277 = vmatprep.subr.bf16.mxu0 0
  %278 = vmatpush1.bf16.msra.mxu0 %v215
  %279 = vmatprep.subr.bf16.mxu0 0
  %280 = vmatpush1.bf16.msra.mxu0 %v216
  %281 = vmatprep.subr.bf16.mxu0 0
  %282 = vmatpush1.bf16.msra.mxu0 %v217
  %283 = vmatprep.subr.bf16.mxu0 0
  %284 = vmatpush1.bf16.msra.mxu0 %v218
  %285 = vmatprep.subr.bf16.mxu0 0
  %286 = vmatpush1.bf16.msra.mxu0 %v219
  %287 = vmatprep.subr.bf16.mxu0 0
  %288 = vmatpush1.bf16.msra.mxu0 %v220
  %289 = vmatprep.subr.bf16.mxu0 0
  %290 = vmatpush1.bf16.msra.mxu0 %v221
  %291 = vmatprep.subr.bf16.mxu0 0
  %292 = vmatpush1.bf16.msra.mxu0 %v222
  %293 = vmatprep.mubr.bf16.mxu0 %v101
  %294 = vmatmul.mubr.bf16.gmra.mrb[0].mxu0 %v100
  %v295 = vpop.f32.mrb[0].mxu0
  %v296 = vadd.f32 %v86, %v295
  %v297 = vpop.f32.mrb[0].mxu0
  %v298 = vpop.f32.mrb[0].mxu0
  %v299 = vadd.f32 %v86, %v298
  %v300 = vpop.f32.mrb[0].mxu0
  %301 = vdwg.mxu0
  %302 = vmatprep.subr.bf16.mxu0 0
  %303 = vmatpush1.bf16.msra.mxu0 %v223
  %304 = vmatprep.subr.bf16.mxu0 0
  %305 = vmatpush1.bf16.msra.mxu0 %v224
  %306 = vmatprep.subr.bf16.mxu0 0
  %307 = vmatpush1.bf16.msra.mxu0 %v225
  %308 = vmatprep.subr.bf16.mxu0 0
  %309 = vmatpush1.bf16.msra.mxu0 %v226
  %310 = vmatprep.subr.bf16.mxu0 0
  %311 = vmatpush1.bf16.msra.mxu0 %v227
  %312 = vmatprep.subr.bf16.mxu0 0
  %313 = vmatpush1.bf16.msra.mxu0 %v228
  %314 = vmatprep.subr.bf16.mxu0 0
  %315 = vmatpush1.bf16.msra.mxu0 %v229
  %316 = vmatprep.subr.bf16.mxu0 0
  %317 = vmatpush1.bf16.msra.mxu0 %v230
  %318 = vmatprep.subr.bf16.mxu0 0
  %319 = vmatpush1.bf16.msra.mxu0 %v231
  %320 = vmatprep.subr.bf16.mxu0 0
  %321 = vmatpush1.bf16.msra.mxu0 0
  %322 = vmatprep.subr.bf16.mxu0 0
  %323 = vmatpush1.bf16.msra.mxu0 0
  %324 = vmatprep.subr.bf16.mxu0 0
  %325 = vmatpush1.bf16.msra.mxu0 0
  %326 = vmatprep.subr.bf16.mxu0 0
  %327 = vmatpush1.bf16.msra.mxu0 0
  %328 = vmatprep.subr.bf16.mxu0 0
  %329 = vmatpush1.bf16.msra.mxu0 0
  %330 = vmatprep.subr.bf16.mxu0 0
  %331 = vmatpush1.bf16.msra.mxu0 0
  %332 = vmatprep.subr.bf16.mxu0 0
  %333 = vmatpush1.bf16.msra.mxu0 0
  %334 = vmatprep.mubr.bf16.mxu0 %v259
  %335 = vmatmul.mubr.bf16.gmra.mrb[0].mxu0 %v102
  %v336 = vpop.f32.mrb[0].mxu0
  %v337 = vadd.f32 %v296, %v336
  %v338 = vpop.f32.mrb[0].mxu0
  %v339 = vpop.f32.mrb[0].mxu0
  %v340 = vadd.f32 %v299, %v339
  %v341 = vpop.f32.mrb[0].mxu0
  %342 = vdwg.mxu0
  %v343 = vmax.f32 %v337, 0.0
  %v344 = vmax.f32 %v340, 0.0
  %v345 = vpack.c.bf16 %v344, %v343
  %v346 = vld [vmem:[%s3] sm:$0xf]
  %v347 = vld [vmem:[%s3 + $0x4] sm:$0xf]
  %v348 = vld [vmem:[%s3 + $0x8] sm:$0xf]
  %v349 = vld [vmem:[%s3 + $0xc] sm:$0xf]
  %v350 = vld [vmem:[%s3 + $0x10] sm:$0xf]
  %v351 = vld [vmem:[%s3 + $0x14] sm:$0xf]
  %v352 = vld [vmem:[%s3 + $0x18] sm:$0xf]
  %v353 = vld [vmem:[%s3 + $0x1c] sm:$0xf]
  %v354 = vld [vmem:[%s3 + $0x20] sm:$0xf]
  %v355 = vld [vmem:[%s3 + $0x24] sm:$0xf]
  %v356 = vld [vmem:[%s3 + $0x28] sm:$0xf]
  %v357 = vld [vmem:[%s3 + $0x2c] sm:$0xf]
  %v358 = vld [vmem:[%s3 + $0x30] sm:$0xf]
  %v359 = vld [vmem:[%s3 + $0x34] sm:$0xf]
  %v360 = vld [vmem:[%s3 + $0x38] sm:$0xf]
  %v361 = vld [vmem:[%s4] sm:$0x1]
  %v363 = vlaneseq
  %v364 = vshrl.u32 %v363, 7
  %v365 = vsub.s32 0, %v364
  %v366 = vrot.slane %v361, %v365
  %v383 = vunpack.c.l.b16 %v346
  %v384 = vunpack.c.l.b16 %v347
  %v385 = vunpack.c.l.b16 %v348
  %v386 = vunpack.c.l.b16 %v349
  %v387 = vunpack.c.l.b16 %v350
  %v388 = vunpack.c.l.b16 %v351
  %v389 = vunpack.c.l.b16 %v352
  %v390 = vunpack.c.l.b16 %v353
  %v391 = vunpack.c.l.b16 %v354
  %v392 = vunpack.c.l.b16 %v355
  %v393 = vunpack.c.l.b16 %v356
  %v394 = vunpack.c.l.b16 %v357
  %v395 = vunpack.c.l.b16 %v358
  %v396 = vunpack.c.l.b16 %v359
  %v397 = vunpack.c.l.b16 %v360
  %v398 = vpack.c.b16 %v384, %v383
  %v399 = vpack.c.b16 %v386, %v385
  %v400 = vpack.c.b16 %v388, %v387
  %v401 = vpack.c.b16 %v390, %v389
  %v402 = vpack.c.b16 %v392, %v391
  %v403 = vpack.c.b16 %v394, %v393
  %v404 = vpack.c.b16 %v396, %v395
  %v405 = vpack.c.b16 %v397, %v397
  %vm413 = vcmask 982016
  %v415 = vsel %vm413, %v345, 0
  %vm417 = vcmask 1043456
  %v419 = vsel %vm417, %v405, 0
  %421 = vmatprep.subr.bf16.mxu0 0
  %422 = vmatpush1.bf16.msra.mxu0 %v398
  %423 = vmatprep.subr.bf16.mxu0 0
  %424 = vmatpush1.bf16.msra.mxu0 %v399
  %425 = vmatprep.subr.bf16.mxu0 0
  %426 = vmatpush1.bf16.msra.mxu0 %v400
  %427 = vmatprep.subr.bf16.mxu0 0
  %428 = vmatpush1.bf16.msra.mxu0 %v401
  %429 = vmatprep.subr.bf16.mxu0 0
  %430 = vmatpush1.bf16.msra.mxu0 %v402
  %431 = vmatprep.subr.bf16.mxu0 0
  %432 = vmatpush1.bf16.msra.mxu0 %v403
  %433 = vmatprep.subr.bf16.mxu0 0
  %434 = vmatpush1.bf16.msra.mxu0 %v404
  %435 = vmatprep.subr.bf16.mxu0 0
  %436 = vmatpush1.bf16.msra.mxu0 %v419
  %437 = vmatprep.subr.bf16.mxu0 0
  %438 = vmatpush1.bf16.msra.mxu0 0
  %439 = vmatprep.subr.bf16.mxu0 0
  %440 = vmatpush1.bf16.msra.mxu0 0
  %441 = vmatprep.subr.bf16.mxu0 0
  %442 = vmatpush1.bf16.msra.mxu0 0
  %443 = vmatprep.subr.bf16.mxu0 0
  %444 = vmatpush1.bf16.msra.mxu0 0
  %445 = vmatprep.subr.bf16.mxu0 0
  %446 = vmatpush1.bf16.msra.mxu0 0
  %447 = vmatprep.subr.bf16.mxu0 0
  %448 = vmatpush1.bf16.msra.mxu0 0
  %449 = vmatprep.subr.bf16.mxu0 0
  %450 = vmatpush1.bf16.msra.mxu0 0
  %451 = vmatprep.subr.bf16.mxu0 0
  %452 = vmatpush1.bf16.msra.mxu0 0
  %453 = vmatprep.mubr.bf16.mxu0 0
  %454 = vmatmul.mubr.bf16.gmra.mrb[0].mxu0 %v415
  %v455 = vpop.f32.mrb[0].mxu0
  %v456 = vadd.f32 %v366, %v455
  %v457 = vpop.f32.mrb[0].mxu0
  %v458 = vpop.f32.mrb[0].mxu0
  %v459 = vadd.f32 %v366, %v458
  %v460 = vpop.f32.mrb[0].mxu0
  %461 = vdwg.mxu0
  %v462 = vmax.f32 %v456, 0.0
  %v463 = vmax.f32 %v459, 0.0
  %v464 = vpack.c.bf16 %v463, %v462
  %v465 = vld [vmem:[%s5] sm:$0xf]
  %v466 = vld [vmem:[%s5 + $0x4] sm:$0xf]
  %v467 = vld [vmem:[%s5 + $0x8] sm:$0xf]
  %v468 = vld [vmem:[%s5 + $0xc] sm:$0xf]
  %v469 = vld [vmem:[%s5 + $0x10] sm:$0xf]
  %v470 = vld [vmem:[%s5 + $0x14] sm:$0xf]
  %v471 = vld [vmem:[%s5 + $0x18] sm:$0xf]
  %v472 = vld [vmem:[%s5 + $0x1c] sm:$0xf]
  %v473 = vld [vmem:[%s5 + $0x20] sm:$0xf]
  %v474 = vld [vmem:[%s5 + $0x24] sm:$0xf]
  %v475 = vld [vmem:[%s5 + $0x28] sm:$0x3]
  %v476 = vld [vmem:[%s6] sm:$0x1]
  %v478 = vlaneseq
  %v479 = vshrl.u32 %v478, 7
  %v480 = vsub.s32 0, %v479
  %v481 = vrot.slane %v476, %v480
  %v494 = vunpack.c.l.b16 %v465
  %v495 = vunpack.c.l.b16 %v466
  %v496 = vunpack.c.l.b16 %v467
  %v497 = vunpack.c.l.b16 %v468
  %v498 = vunpack.c.l.b16 %v469
  %v499 = vunpack.c.l.b16 %v470
  %v500 = vunpack.c.l.b16 %v471
  %v501 = vunpack.c.l.b16 %v472
  %v502 = vunpack.c.l.b16 %v473
  %v503 = vunpack.c.l.b16 %v474
  %v504 = vunpack.c.l.b16 %v475
  %v505 = vpack.c.b16 %v495, %v494
  %v506 = vpack.c.b16 %v497, %v496
  %v507 = vpack.c.b16 %v499, %v498
  %v508 = vpack.c.b16 %v501, %v500
  %v509 = vpack.c.b16 %v503, %v502
  %v510 = vpack.c.b16 %v504, %v504
  %vm516 = vcmask 687104
  %v518 = vsel %vm516, %v464, 0
  %vm520 = vcmask 1041408
  %v522 = vsel %vm520, %v510, 0
  %524 = vmatprep.subr.bf16.mxu0 0
  %525 = vmatpush1.bf16.msra.mxu0 %v505
  %526 = vmatprep.subr.bf16.mxu0 0
  %527 = vmatpush1.bf16.msra.mxu0 %v506
  %528 = vmatprep.subr.bf16.mxu0 0
  %529 = vmatpush1.bf16.msra.mxu0 %v507
  %530 = vmatprep.subr.bf16.mxu0 0
  %531 = vmatpush1.bf16.msra.mxu0 %v508
  %532 = vmatprep.subr.bf16.mxu0 0
  %533 = vmatpush1.bf16.msra.mxu0 %v509
  %534 = vmatprep.subr.bf16.mxu0 0
  %535 = vmatpush1.bf16.msra.mxu0 %v522
  %536 = vmatprep.subr.bf16.mxu0 0
  %537 = vmatpush1.bf16.msra.mxu0 0
  %538 = vmatprep.subr.bf16.mxu0 0
  %539 = vmatpush1.bf16.msra.mxu0 0
  %540 = vmatprep.subr.bf16.mxu0 0
  %541 = vmatpush1.bf16.msra.mxu0 0
  %542 = vmatprep.subr.bf16.mxu0 0
  %543 = vmatpush1.bf16.msra.mxu0 0
  %544 = vmatprep.subr.bf16.mxu0 0
  %545 = vmatpush1.bf16.msra.mxu0 0
  %546 = vmatprep.subr.bf16.mxu0 0
  %547 = vmatpush1.bf16.msra.mxu0 0
  %548 = vmatprep.subr.bf16.mxu0 0
  %549 = vmatpush1.bf16.msra.mxu0 0
  %550 = vmatprep.subr.bf16.mxu0 0
  %551 = vmatpush1.bf16.msra.mxu0 0
  %552 = vmatprep.subr.bf16.mxu0 0
  %553 = vmatpush1.bf16.msra.mxu0 0
  %554 = vmatprep.subr.bf16.mxu0 0
  %555 = vmatpush1.bf16.msra.mxu0 0
  %556 = vmatprep.mubr.bf16.mxu0 0
  %557 = vmatmul.mubr.bf16.gmra.mrb[0].mxu0 %v518
  %v558 = vpop.f32.mrb[0].mxu0
  %v559 = vadd.f32 %v481, %v558
  %v560 = vpop.f32.mrb[0].mxu0
  %v561 = vpop.f32.mrb[0].mxu0
  %v562 = vadd.f32 %v481, %v561
  %v563 = vpop.f32.mrb[0].mxu0
  %564 = vdwg.mxu0
  %vm565 = vcmask 15360
  %566 = vst.msk [vmem:[%s7] sm:$0xff] %vm565, %v559
  %567 = vst.msk [vmem:[%s7 + $0x8] sm:$0xff] %vm565, %v562
  // Predicated region
  $region30: #{forward.5} parent=0 // pred_check
    _
  $region31: #{forward.5} parent=0 // pred_check_branch
    %569 = sbr.rel (0) target = $region33
  $region32: #{forward.5} parent=0 // pred_region
    _
  $region33: #{forward.5} parent=0 // pred_fallthru
    _
  // Predicated region
  $region34: #{forward.5} parent=0 // pred_check
    _
  $region35: #{forward.5} parent=0 // pred_check_branch
    %571 = sbr.rel (0) target = $region37
  $region36: #{forward.5} parent=0 // pred_region
    _
  $region37: #{forward.5} parent=0 // pred_fallthru
    _

</llo_original>
